<compile_context>
chip_gen: v5e
topology: v5e:2x2
jax: 0.10.0
libtpu: 0.0.40
codegen_flags: <defaults>
</compile_context>

<pallas_src>
import functools

import jax
import jax.numpy as jnp
from jax.experimental import pallas as pl
from jax.experimental.pallas import tpu as pltpu

C1 = 32        # conv1 out channels
C2 = 64        # conv2 out channels
H1 = 256       # fc1
H2 = 128       # fc2
OUT_PAD = 128  # lane-dense padded fc3 output width


def _round_up(n, m):
    return ((n + m - 1) // m) * m


def _make_kernel(elem_dtype):
    """Kernel for one batch tile.  No reshapes/concats: pure matmul + bias/ReLU."""

    def kernel(x_ref, w1_ref, b1_ref, w2_ref, b2_ref,
               fc1w_ref, fc1b_ref, fc2w_ref, fc2b_ref,
               fc3w_ref, fc3b_ref, out_ref):
        f32 = jnp.float32
        bf16 = jnp.bfloat16
        ew = elem_dtype  # f32 on v5e (no bf16 VPU), bf16 on v6e/v7x

        def bias_relu(acc_f32, b_ref):
            h = acc_f32.astype(ew) + b_ref[...].astype(ew)
            return jnp.maximum(h, 0.0).astype(bf16)

        x = x_ref[...].astype(bf16)                                   # (B_t, L+2)
        # conv1 (banded matmul): (B_t, L+2) @ (L+2, L*C1); max_pool1d(k=1)=identity
        h1 = bias_relu(jnp.dot(x, w1_ref[...], preferred_element_type=f32), b1_ref)
        # conv2 (banded matmul): (B_t, L*C1) @ (L*C1, L*C2); max_pool1d(k=1)=identity
        h2 = bias_relu(jnp.dot(h1, w2_ref[...], preferred_element_type=f32), b2_ref)
        # fc1 (flatten is already folded into the fc1 weight permutation).
        # TODO(synk): dropout(p=0.2) treated as eval-mode identity (inference only).
        z1 = bias_relu(jnp.dot(h2, fc1w_ref[...], preferred_element_type=f32), fc1b_ref)
        z2 = bias_relu(jnp.dot(z1, fc2w_ref[...], preferred_element_type=f32), fc2b_ref)
        # fc3 kept in f32 (bias add + output) for Q-value argmax stability.
        out_ref[...] = (jnp.dot(z2, fc3w_ref[...], preferred_element_type=f32)
                        + fc3b_ref[...])

    return kernel


def init_params(key, input_size, output_size):
    """Deterministic params in PyTorch-native shapes (kaiming-uniform-ish)."""
    ks = jax.random.split(key, 10)

    def u(k, shape, fan_in):
        b = 1.0 / jnp.sqrt(jnp.float32(fan_in))
        return jax.random.uniform(k, shape, jnp.float32, -b, b)

    F1 = C2 * input_size
    return dict(
        w1=u(ks[0], (C1, 1, 3), 1 * 3),     b1=u(ks[1], (C1,), 1 * 3),
        w2=u(ks[2], (C2, C1, 3), C1 * 3),   b2=u(ks[3], (C2,), C1 * 3),
        fc1_w=u(ks[4], (H1, F1), F1),       fc1_b=u(ks[5], (H1,), F1),
        fc2_w=u(ks[6], (H2, H1), H1),       fc2_b=u(ks[7], (H2,), H1),
        fc3_w=u(ks[8], (output_size, H2), H2),
        fc3_b=u(ks[9], (output_size,), H2),
    )


def prepare_kernel_params(params):
    """One-time conversion of PyTorch-shaped params into banded kernel layout."""
    L = params['fc1_w'].shape[1] // C2
    out_dim = params['fc3_w'].shape[0]
    f32 = jnp.float32
    bf16 = jnp.bfloat16

    # conv1 as banded matmul:  h1[b, l*C1 + c] = sum_k x_pad[b, l + k] * w1[c, 0, k]
    w1 = params['w1'][:, 0, :].astype(f32)                         # (C1, 3)
    w1_band = jnp.zeros((L + 2, L * C1), f32)
    for l in range(L):
        for k in range(3):
            w1_band = w1_band.at[l + k, l * C1:(l + 1) * C1].set(w1[:, k])
    b1 = jnp.tile(params['b1'].astype(f32), L).reshape(1, L * C1)

    # conv2 as banded matmul (l-major / c-minor activations on both sides):
    #   h2[b, lo*C2 + co] = sum_{k, ci} h1[b, (lo+k-1)*C1 + ci] * w2[co, ci, k]
    w2_k = jnp.transpose(params['w2'].astype(f32), (2, 1, 0))      # (3, C1, C2)
    w2_band = jnp.zeros((L * C1, L * C2), f32)
    for lo in range(L):
        for k in range(3):
            li = lo + k - 1
            if 0 <= li < L:
                w2_band = w2_band.at[li * C1:(li + 1) * C1,
                                     lo * C2:(lo + 1) * C2].set(w2_k[k])
    b2 = jnp.tile(params['b2'].astype(f32), L).reshape(1, L * C2)

    # torch flatten order is (c*L + l); kernel layout is (l*C2 + c) -> permute fc1.
    fc1w_t = jnp.transpose(
        params['fc1_w'].reshape(H1, C2, L).transpose(0, 2, 1).reshape(H1, L * C2),
        (1, 0))                                                    # (L*C2, H1)
    fc1b = params['fc1_b'].reshape(1, H1).astype(f32)
    fc2w_t = params['fc2_w'].T                                     # (H1, H2)
    fc2b = params['fc2_b'].reshape(1, H2).astype(f32)
    # lane-dense (128-wide) padded fc3
    fc3w_p = jnp.zeros((H2, OUT_PAD), f32).at[:, :out_dim].set(params['fc3_w'].T)
    fc3b_p = jnp.zeros((1, OUT_PAD), f32).at[:, :out_dim].set(params['fc3_b'])

    return dict(
        w1=w1_band.astype(bf16), b1=b1,
        w2=w2_band.astype(bf16), b2=b2,
        fc1w=fc1w_t.astype(bf16), fc1b=fc1b,
        fc2w=fc2w_t.astype(bf16), fc2b=fc2b,
        fc3w=fc3w_p.astype(bf16), fc3b=fc3b_p,
    )


def _bf16_elementwise():
    """bf16 VALU exists on v6e/v7x; v5e and older keep f32 elementwise math."""
    try:
        kind = jax.devices()[0].device_kind.lower()
    except Exception:
        return False
    return any(t in kind for t in ("v6", "v7", "tpu7"))


def _vmem_limit_bytes(B_t, L):
    """Right-sized VMEM budget (weights double-buffered + activation temps)."""
    w = 2 * 2 * ((L + 2) * L * C1 + L * C1 * L * C2 + L * C2 * H1
                 + H1 * H2 + H2 * OUT_PAD)                      # bf16, x2 buffers
    act = B_t * (128 * 4 * 2 + OUT_PAD * 4 * 2                  # x / out, x2 buffers
                 + 6 * (L * C1 + L * C2 + H1 + H2))             # f32 + bf16 temps
    return int(min(100 * 2**20, max(16 * 2**20, 2 * (w + act))))


@functools.partial(jax.jit, static_argnames=("out_dim", "block_b"))
def convqnet_forward(x, kparams, *, out_dim, block_b=256):
    """x: (B, input_size) float32 -> (B, out_dim) float32."""
    B, L = x.shape
    B8 = _round_up(B, 8)
    # Aim for >=4 grid steps on large batches: pipelines the x DMA and lets
    # v7x shard "parallel" steps across its 2 TensorCores.  B_t stays a
    # multiple of 8 and is capped so tiles fit v7x's 64 MiB VMEM comfortably.
    B_t = max(8, min(block_b, _round_up(-(-B8 // 4), 8)))
    Bp = _round_up(B8, B_t)
    n_blk = Bp // B_t

    # per-call glue: batch zero-pad + conv 'same' padding -> (Bp, L+2); no im2col.
    xp = jnp.pad(x.astype(jnp.float32), ((0, Bp - B), (1, 1)))

    weights = (kparams['w1'], kparams['b1'], kparams['w2'], kparams['b2'],
               kparams['fc1w'], kparams['fc1b'], kparams['fc2w'], kparams['fc2b'],
               kparams['fc3w'], kparams['fc3b'])
    # weights: full-array blocks with constant index maps -> VMEM-resident.
    w_specs = [pl.BlockSpec(w.shape, lambda i: (0, 0)) for w in weights]

    elem_dtype = jnp.bfloat16 if _bf16_elementwise() else jnp.float32

    out = pl.pallas_call(
        _make_kernel(elem_dtype),
        out_shape=jax.ShapeDtypeStruct((Bp, OUT_PAD), jnp.float32),
        grid=(n_blk,),
        in_specs=[pl.BlockSpec((B_t, L + 2), lambda i: (i, 0))] + w_specs,
        out_specs=pl.BlockSpec((B_t, OUT_PAD), lambda i: (i, 0)),
        compiler_params=pltpu.CompilerParams(
            dimension_semantics=("parallel",),
            vmem_limit_bytes=_vmem_limit_bytes(B_t, L)),
    )(xp, *weights)

    return out[:B, :out_dim]


def reference_forward(x, params):
    """Pure-JAX reference matching the PyTorch forward exactly (NCW layout, f32)."""
    B, L = x.shape
    xr = x.reshape(B, 1, L)
    h = jax.lax.conv_general_dilated(
        xr, params['w1'], (1,), ((1, 1),),
        dimension_numbers=('NCH', 'OIH', 'NCH'))
    h = jax.nn.relu(h + params['b1'][None, :, None])
    h = jax.lax.conv_general_dilated(
        h, params['w2'], (1,), ((1, 1),),
        dimension_numbers=('NCH', 'OIH', 'NCH'))
    h = jax.nn.relu(h + params['b2'][None, :, None])
    flat = h.reshape(B, -1)                                   # torch .view(B,-1): (c*L + l)
    z1 = jax.nn.relu(flat @ params['fc1_w'].T + params['fc1_b'])
    z2 = jax.nn.relu(z1 @ params['fc2_w'].T + params['fc2_b'])
    return z2 @ params['fc3_w'].T + params['fc3_b']


if __name__ == "__main__":
    input_size = 16
    output_size = 4
    batch = 2

    key = jax.random.PRNGKey(0)
    k_x, k_p = jax.random.split(key)
    x = jax.random.normal(k_x, (batch, input_size), jnp.float32)
    params = init_params(k_p, input_size, output_size)
    kparams = prepare_kernel_params(params)

    out = convqnet_forward(x, kparams, out_dim=output_size)
    out = jax.block_until_ready(out)

    ref = reference_forward(x, params)
    assert out.shape == (batch, output_size)
    assert jnp.allclose(out, ref, rtol=1e-2, atol=1e-2), (out, ref)

    print("KERNEL_OK")
</pallas_src>

<mosaic_0001>
module attributes {stable_mosaic.version = 11 : i64} {
  func.func @kernel(%arg0: i32, %arg1: memref<8x18xf32, #tpu.memory_space<vmem>>, %arg2: memref<18x512xbf16, #tpu.memory_space<vmem>>, %arg3: memref<1x512xf32, #tpu.memory_space<vmem>>, %arg4: memref<512x1024xbf16, #tpu.memory_space<vmem>>, %arg5: memref<1x1024xf32, #tpu.memory_space<vmem>>, %arg6: memref<1024x256xbf16, #tpu.memory_space<vmem>>, %arg7: memref<1x256xf32, #tpu.memory_space<vmem>>, %arg8: memref<256x128xbf16, #tpu.memory_space<vmem>>, %arg9: memref<1x128xf32, #tpu.memory_space<vmem>>, %arg10: memref<128x128xbf16, #tpu.memory_space<vmem>>, %arg11: memref<1x128xf32, #tpu.memory_space<vmem>>, %arg12: memref<8x128xf32, #tpu.memory_space<vmem>>) attributes {dimension_semantics = [#tpu.dimension_semantics<parallel>], iteration_bounds = array<i64: 1>, scalar_prefetch = 0 : i64, scratch_operands = 0 : i64, tpu.core_type = #tpu.core_type<tc>, window_params = [{transform_indices = @transform_0, window_bounds = array<i64: 8, 18>}, {pipeline_mode = #tpu.pipeline_mode<synchronous>, transform_indices = @transform_1, window_bounds = array<i64: 18, 512>}, {pipeline_mode = #tpu.pipeline_mode<synchronous>, transform_indices = @transform_2, window_bounds = array<i64: 1, 512>}, {pipeline_mode = #tpu.pipeline_mode<synchronous>, transform_indices = @transform_3, window_bounds = array<i64: 512, 1024>}, {pipeline_mode = #tpu.pipeline_mode<synchronous>, transform_indices = @transform_4, window_bounds = array<i64: 1, 1024>}, {pipeline_mode = #tpu.pipeline_mode<synchronous>, transform_indices = @transform_5, window_bounds = array<i64: 1024, 256>}, {pipeline_mode = #tpu.pipeline_mode<synchronous>, transform_indices = @transform_6, window_bounds = array<i64: 1, 256>}, {pipeline_mode = #tpu.pipeline_mode<synchronous>, transform_indices = @transform_7, window_bounds = array<i64: 256, 128>}, {pipeline_mode = #tpu.pipeline_mode<synchronous>, transform_indices = @transform_8, window_bounds = array<i64: 1, 128>}, {pipeline_mode = #tpu.pipeline_mode<synchronous>, transform_indices = @transform_9, window_bounds = array<i64: 128, 128>}, {pipeline_mode = #tpu.pipeline_mode<synchronous>, transform_indices = @transform_10, window_bounds = array<i64: 1, 128>}, {transform_indices = @transform_11, window_bounds = array<i64: 8, 128>}]} {
    %c0 = arith.constant 0 : index
    %c0_0 = arith.constant 0 : index
    %0 = vector.load %arg1[%c0, %c0_0] : memref<8x18xf32, #tpu.memory_space<vmem>>, vector<8x18xf32>
    %1 = arith.truncf %0 : vector<8x18xf32> to vector<8x18xbf16>
    %c0_1 = arith.constant 0 : index
    %c0_2 = arith.constant 0 : index
    %2 = vector.load %arg2[%c0_1, %c0_2] : memref<18x512xbf16, #tpu.memory_space<vmem>>, vector<18x512xbf16>
    %cst = arith.constant dense<0.000000e+00> : vector<8x512xf32>
    %3 = tpu.matmul %1, %2, %cst {dimension_numbers = #tpu.dot_dimension_numbers<[1], [0], [0], [1], [0, 0, 1, 1], [], []>} : vector<8x18xbf16>, vector<18x512xbf16>, vector<8x512xf32> -> vector<8x512xf32>
    %c0_3 = arith.constant 0 : index
    %c0_4 = arith.constant 0 : index
    %4 = vector.load %arg3[%c0_3, %c0_4] : memref<1x512xf32, #tpu.memory_space<vmem>>, vector<1x512xf32>
    %5 = vector.broadcast %4 : vector<1x512xf32> to vector<8x512xf32>
    %6 = arith.addf %3, %5 : vector<8x512xf32>
    %cst_5 = arith.constant 0.000000e+00 : f32
    %7 = vector.broadcast %cst_5 : f32 to vector<8x512xf32>
    %8 = arith.maximumf %6, %7 : vector<8x512xf32>
    %9 = arith.truncf %8 : vector<8x512xf32> to vector<8x512xbf16>
    %c0_6 = arith.constant 0 : index
    %c0_7 = arith.constant 0 : index
    %10 = vector.load %arg4[%c0_6, %c0_7] : memref<512x1024xbf16, #tpu.memory_space<vmem>>, vector<512x1024xbf16>
    %cst_8 = arith.constant dense<0.000000e+00> : vector<8x1024xf32>
    %11 = tpu.matmul %9, %10, %cst_8 {dimension_numbers = #tpu.dot_dimension_numbers<[1], [0], [0], [1], [0, 0, 1, 1], [], []>} : vector<8x512xbf16>, vector<512x1024xbf16>, vector<8x1024xf32> -> vector<8x1024xf32>
    %c0_9 = arith.constant 0 : index
    %c0_10 = arith.constant 0 : index
    %12 = vector.load %arg5[%c0_9, %c0_10] : memref<1x1024xf32, #tpu.memory_space<vmem>>, vector<1x1024xf32>
    %13 = vector.broadcast %12 : vector<1x1024xf32> to vector<8x1024xf32>
    %14 = arith.addf %11, %13 : vector<8x1024xf32>
    %cst_11 = arith.constant 0.000000e+00 : f32
    %15 = vector.broadcast %cst_11 : f32 to vector<8x1024xf32>
    %16 = arith.maximumf %14, %15 : vector<8x1024xf32>
    %17 = arith.truncf %16 : vector<8x1024xf32> to vector<8x1024xbf16>
    %c0_12 = arith.constant 0 : index
    %c0_13 = arith.constant 0 : index
    %18 = vector.load %arg6[%c0_12, %c0_13] : memref<1024x256xbf16, #tpu.memory_space<vmem>>, vector<1024x256xbf16>
    %cst_14 = arith.constant dense<0.000000e+00> : vector<8x256xf32>
    %19 = tpu.matmul %17, %18, %cst_14 {dimension_numbers = #tpu.dot_dimension_numbers<[1], [0], [0], [1], [0, 0, 1, 1], [], []>} : vector<8x1024xbf16>, vector<1024x256xbf16>, vector<8x256xf32> -> vector<8x256xf32>
    %c0_15 = arith.constant 0 : index
    %c0_16 = arith.constant 0 : index
    %20 = vector.load %arg7[%c0_15, %c0_16] : memref<1x256xf32, #tpu.memory_space<vmem>>, vector<1x256xf32>
    %21 = vector.broadcast %20 : vector<1x256xf32> to vector<8x256xf32>
    %22 = arith.addf %19, %21 : vector<8x256xf32>
    %cst_17 = arith.constant 0.000000e+00 : f32
    %23 = vector.broadcast %cst_17 : f32 to vector<8x256xf32>
    %24 = arith.maximumf %22, %23 : vector<8x256xf32>
    %25 = arith.truncf %24 : vector<8x256xf32> to vector<8x256xbf16>
    %c0_18 = arith.constant 0 : index
    %c0_19 = arith.constant 0 : index
    %26 = vector.load %arg8[%c0_18, %c0_19] : memref<256x128xbf16, #tpu.memory_space<vmem>>, vector<256x128xbf16>
    %cst_20 = arith.constant dense<0.000000e+00> : vector<8x128xf32>
    %27 = tpu.matmul %25, %26, %cst_20 {dimension_numbers = #tpu.dot_dimension_numbers<[1], [0], [0], [1], [0, 0, 1, 1], [], []>} : vector<8x256xbf16>, vector<256x128xbf16>, vector<8x128xf32> -> vector<8x128xf32>
    %c0_21 = arith.constant 0 : index
    %c0_22 = arith.constant 0 : index
    %28 = vector.load %arg9[%c0_21, %c0_22] : memref<1x128xf32, #tpu.memory_space<vmem>>, vector<1x128xf32>
    %29 = vector.broadcast %28 : vector<1x128xf32> to vector<8x128xf32>
    %30 = arith.addf %27, %29 : vector<8x128xf32>
    %cst_23 = arith.constant 0.000000e+00 : f32
    %31 = vector.broadcast %cst_23 : f32 to vector<8x128xf32>
    %32 = arith.maximumf %30, %31 : vector<8x128xf32>
    %33 = arith.truncf %32 : vector<8x128xf32> to vector<8x128xbf16>
    %c0_24 = arith.constant 0 : index
    %c0_25 = arith.constant 0 : index
    %34 = vector.load %arg10[%c0_24, %c0_25] : memref<128x128xbf16, #tpu.memory_space<vmem>>, vector<128x128xbf16>
    %cst_26 = arith.constant dense<0.000000e+00> : vector<8x128xf32>
    %35 = tpu.matmul %33, %34, %cst_26 {dimension_numbers = #tpu.dot_dimension_numbers<[1], [0], [0], [1], [0, 0, 1, 1], [], []>} : vector<8x128xbf16>, vector<128x128xbf16>, vector<8x128xf32> -> vector<8x128xf32>
    %c0_27 = arith.constant 0 : index
    %c0_28 = arith.constant 0 : index
    %36 = vector.load %arg11[%c0_27, %c0_28] : memref<1x128xf32, #tpu.memory_space<vmem>>, vector<1x128xf32>
    %37 = vector.broadcast %36 : vector<1x128xf32> to vector<8x128xf32>
    %38 = arith.addf %35, %37 : vector<8x128xf32>
    %c0_29 = arith.constant 0 : index
    %c0_30 = arith.constant 0 : index
    %39 = vector.load %arg12[%c0_29, %c0_30] : memref<8x128xf32, #tpu.memory_space<vmem>>, vector<8x128xf32>
    tpu.vector_store %arg12[%c0_29, %c0_30], %38 {strides = array<i32>} : memref<8x128xf32, #tpu.memory_space<vmem>>, vector<8x128xf32>,
    return
  }
  func.func @transform_0(%arg0: i32) -> (i32, i32) {
    %c0_i32 = arith.constant 0 : i32
    %c0_i32_0 = arith.constant 0 : i32
    return %arg0, %c0_i32 : i32, i32
  }
  func.func @transform_1(%arg0: i32) -> (i32, i32) {
    %c0_i32 = arith.constant 0 : i32
    %c0_i32_0 = arith.constant 0 : i32
    %c0_i32_1 = arith.constant 0 : i32
    return %c0_i32, %c0_i32_0 : i32, i32
  }
  func.func @transform_2(%arg0: i32) -> (i32, i32) {
    %c0_i32 = arith.constant 0 : i32
    %c0_i32_0 = arith.constant 0 : i32
    %c0_i32_1 = arith.constant 0 : i32
    return %c0_i32, %c0_i32_0 : i32, i32
  }
  func.func @transform_3(%arg0: i32) -> (i32, i32) {
    %c0_i32 = arith.constant 0 : i32
    %c0_i32_0 = arith.constant 0 : i32
    %c0_i32_1 = arith.constant 0 : i32
    return %c0_i32, %c0_i32_0 : i32, i32
  }
  func.func @transform_4(%arg0: i32) -> (i32, i32) {
    %c0_i32 = arith.constant 0 : i32
    %c0_i32_0 = arith.constant 0 : i32
    %c0_i32_1 = arith.constant 0 : i32
    return %c0_i32, %c0_i32_0 : i32, i32
  }
  func.func @transform_5(%arg0: i32) -> (i32, i32) {
    %c0_i32 = arith.constant 0 : i32
    %c0_i32_0 = arith.constant 0 : i32
    %c0_i32_1 = arith.constant 0 : i32
    return %c0_i32, %c0_i32_0 : i32, i32
  }
  func.func @transform_6(%arg0: i32) -> (i32, i32) {
    %c0_i32 = arith.constant 0 : i32
    %c0_i32_0 = arith.constant 0 : i32
    %c0_i32_1 = arith.constant 0 : i32
    return %c0_i32, %c0_i32_0 : i32, i32
  }
  func.func @transform_7(%arg0: i32) -> (i32, i32) {
    %c0_i32 = arith.constant 0 : i32
    %c0_i32_0 = arith.constant 0 : i32
    %c0_i32_1 = arith.constant 0 : i32
    return %c0_i32, %c0_i32_0 : i32, i32
  }
  func.func @transform_8(%arg0: i32) -> (i32, i32) {
    %c0_i32 = arith.constant 0 : i32
    %c0_i32_0 = arith.constant 0 : i32
    %c0_i32_1 = arith.constant 0 : i32
    return %c0_i32, %c0_i32_0 : i32, i32
  }
  func.func @transform_9(%arg0: i32) -> (i32, i32) {
    %c0_i32 = arith.constant 0 : i32
    %c0_i32_0 = arith.constant 0 : i32
    %c0_i32_1 = arith.constant 0 : i32
    return %c0_i32, %c0_i32_0 : i32, i32
  }
  func.func @transform_10(%arg0: i32) -> (i32, i32) {
    %c0_i32 = arith.constant 0 : i32
    %c0_i32_0 = arith.constant 0 : i32
    %c0_i32_1 = arith.constant 0 : i32
    return %c0_i32, %c0_i32_0 : i32, i32
  }
  func.func @transform_11(%arg0: i32) -> (i32, i32) {
    %c0_i32 = arith.constant 0 : i32
    %c0_i32_0 = arith.constant 0 : i32
    return %arg0, %c0_i32 : i32, i32
  }
}

</mosaic_0001>

<llo_original>
// kernel: convqnet_forward.1
$region0: #{convqnet_forward.1}
  #allocation0 [shape = 'u32[]', space=smem, size = 0x4, offset = 0x4, fixed_abs, tag = 'smem constant byte address 0x4 - core index']
  #allocation1 [shape = 'u32[72,128]{1,0:T(1,128)}', space=vmem, size = 0x9000, scoped, tag = 'internal scratch']
  %s0 = inlined_call_operand.vmem [shape: f32[8,18], index: 0, kind: input, shape index: {}]
  %s1 = inlined_call_operand.hbm [shape: bf16[18,512], index: 1, kind: input, shape index: {}]
  %s2 = inlined_call_operand.vmem [shape: f32[1,512], index: 2, kind: input, shape index: {}]
  %s3 = inlined_call_operand.hbm [shape: bf16[512,1024], index: 3, kind: input, shape index: {}]
  %s4 = inlined_call_operand.vmem [shape: f32[1,1024], index: 4, kind: input, shape index: {}]
  %s5 = inlined_call_operand.hbm [shape: bf16[1024,256], index: 5, kind: input, shape index: {}]
  %s6 = inlined_call_operand.hbm [shape: f32[1,256], index: 6, kind: input, shape index: {}]
  %s7 = inlined_call_operand.hbm [shape: bf16[256,128], index: 7, kind: input, shape index: {}]
  %s8 = inlined_call_operand.vmem [shape: f32[1,128], index: 8, kind: input, shape index: {}]
  %s9 = inlined_call_operand.hbm [shape: bf16[128,128], index: 9, kind: input, shape index: {}]
  %s10 = inlined_call_operand.vmem [shape: f32[1,128], index: 10, kind: input, shape index: {}]
  %s11 = inlined_call_operand.vmem [shape: f32[8,128], index: 11, kind: output, shape index: {}]
  %s12 = sld [smem:[#allocation0]]
  $region78: #{convqnet_forward.1} parent=0
    _
  %s14 = ssub.s32 1, %s12
  %s15 = scalar_select 0, %s14, %s12
  $region1: #{convqnet_forward.1} parent=0
    #allocation2 [shape = 'u8[24576]{0}', space=vmem, size = 0x6000, scoped, tag = 'input window, operand 1, single buffered']
    #allocation3 [shape = 's32[1]{0}', space=sflag, size = 0x4, scoped, tag = 'scoped memory for convqnet_forward.1']
    #allocation4 [shape = 'u8[1048576]{0}', space=vmem, size = 0x100000, scoped, tag = 'input window, operand 3, single buffered']
    #allocation5 [shape = 's32[1]{0}', space=sflag, size = 0x4, scoped, tag = 'scoped memory for convqnet_forward.1']
    #allocation6 [shape = 'u8[524288]{0}', space=vmem, size = 0x80000, scoped, tag = 'input window, operand 5, single buffered']
    #allocation7 [shape = 'u8[1024]{0}', space=vmem, size = 0x400, scoped, tag = 'input window, operand 6, single buffered']
    #allocation8 [shape = 's32[1]{0}', space=sflag, size = 0x4, scoped, tag = 'scoped memory for convqnet_forward.1']
    #allocation9 [shape = 'u8[65536]{0}', space=vmem, size = 0x10000, scoped, tag = 'input window, operand 7, single buffered']
    #allocation10 [shape = 'u8[32768]{0}', space=vmem, size = 0x8000, scoped, tag = 'input window, operand 9, single buffered']
    #allocation11 [shape = 's32[1]{0}', space=sflag, size = 0x4, scoped, tag = 'scoped memory for convqnet_forward.1']
    %16 = vsyncpa [#allocation3], 0
    %17 = vsyncpa [#allocation5], 0
    %18 = vsyncpa [#allocation8], 0
    %19 = vsyncpa [#allocation11], 0
    // Predicated region
    $region2: #{convqnet_forward.1} parent=1 // pred_check
      _
    $region3: #{convqnet_forward.1} parent=1 // pred_check_branch
      %21 = sbr.rel (0) target = $region5
    $region4: #{convqnet_forward.1} parent=1 // pred_region
      _
    $region5: #{convqnet_forward.1} parent=1 // pred_fallthru
      _
    // Predicated region
    $region6: #{convqnet_forward.1} parent=1 // pred_check
      _
    $region7: #{convqnet_forward.1} parent=1 // pred_check_branch
      %23 = sbr.rel (0) target = $region9
    $region8: #{convqnet_forward.1} parent=1 // pred_region
      %25 = vsyncadd [#allocation3], 0
      %s26 = sshll.u32 %s1, 4
      %s27 = int_to_ptr.hbm [resolvable:$true] %s26
      %s28 = sshll.u32 [#allocation2], 4
      %s29 = int_to_ptr.vmem [resolvable:$true] %s28
      %34 = dma.hbm_to_vmem [thread:$0]  %s27, 768, %s29, [#allocation3], 256, 256, 16
    $region9: #{convqnet_forward.1} parent=1 // pred_fallthru
      _
    // Predicated region
    $region10: #{convqnet_forward.1} parent=1 // pred_check
      _
    $region11: #{convqnet_forward.1} parent=1 // pred_check_branch
      %36 = sbr.rel (0) target = $region13
    $region12: #{convqnet_forward.1} parent=1 // pred_region
      _
    $region13: #{convqnet_forward.1} parent=1 // pred_fallthru
      _
    // Predicated region
    $region14: #{convqnet_forward.1} parent=1 // pred_check
      _
    $region15: #{convqnet_forward.1} parent=1 // pred_check_branch
      %38 = sbr.rel (0) target = $region17
    $region16: #{convqnet_forward.1} parent=1 // pred_region
      %40 = vsyncadd [#allocation5], 0
      %s41 = sshll.u32 %s3, 4
      %s42 = int_to_ptr.hbm [resolvable:$true] %s41
      %s43 = sshll.u32 [#allocation4], 4
      %s44 = int_to_ptr.vmem [resolvable:$true] %s43
      %49 = dma.hbm_to_vmem [thread:$0]  %s42, 32768, %s44, [#allocation5], 512, 512, 32
    $region17: #{convqnet_forward.1} parent=1 // pred_fallthru
      _
    // Predicated region
    $region18: #{convqnet_forward.1} parent=1 // pred_check
      _
    $region19: #{convqnet_forward.1} parent=1 // pred_check_branch
      %51 = sbr.rel (0) target = $region21
    $region20: #{convqnet_forward.1} parent=1 // pred_region
      _
    $region21: #{convqnet_forward.1} parent=1 // pred_fallthru
      _
    // Predicated region
    $region22: #{convqnet_forward.1} parent=1 // pred_check
      _
    $region23: #{convqnet_forward.1} parent=1 // pred_check_branch
      %53 = sbr.rel (0) target = $region25
    $region24: #{convqnet_forward.1} parent=1 // pred_region
      %55 = vsyncadd [#allocation5], 0
      %s56 = sshll.u32 %s5, 4
      %s57 = int_to_ptr.hbm [resolvable:$true] %s56
      %s58 = sshll.u32 [#allocation6], 4
      %s59 = int_to_ptr.vmem [resolvable:$true] %s58
      %64 = dma.hbm_to_vmem [thread:$0]  %s57, 16384, %s59, [#allocation5], 128, 128, 8
    $region25: #{convqnet_forward.1} parent=1 // pred_fallthru
      _
    // Predicated region
    $region26: #{convqnet_forward.1} parent=1 // pred_check
      _
    $region27: #{convqnet_forward.1} parent=1 // pred_check_branch
      %66 = sbr.rel (0) target = $region29
    $region28: #{convqnet_forward.1} parent=1 // pred_region
      %68 = vsyncadd [#allocation8], 0
      %s70 = sshll.u32 %s6, 4
      %s71 = int_to_ptr.hbm [resolvable:$true] %s70
      %s72 = sshll.u32 [#allocation7], 4
      %s73 = int_to_ptr.vmem [resolvable:$true] %s72
      %75 = dma.hbm_to_vmem [thread:$0]  %s71, 32, %s73, [#allocation8]
    $region29: #{convqnet_forward.1} parent=1 // pred_fallthru
      _
    // Predicated region
    $region30: #{convqnet_forward.1} parent=1 // pred_check
      _
    $region31: #{convqnet_forward.1} parent=1 // pred_check_branch
      %77 = sbr.rel (0) target = $region33
    $region32: #{convqnet_forward.1} parent=1 // pred_region
      %79 = vsyncadd [#allocation8], 0
      %s80 = sshll.u32 %s7, 4
      %s81 = int_to_ptr.hbm [resolvable:$true] %s80
      %s82 = sshll.u32 [#allocation9], 4
      %s83 = int_to_ptr.vmem [resolvable:$true] %s82
      %88 = dma.hbm_to_vmem [thread:$0]  %s81, 2048, %s83, [#allocation8], 64, 64, 4
    $region33: #{convqnet_forward.1} parent=1 // pred_fallthru
      _
    // Predicated region
    $region34: #{convqnet_forward.1} parent=1 // pred_check
      _
    $region35: #{convqnet_forward.1} parent=1 // pred_check_branch
      %90 = sbr.rel (0) target = $region37
    $region36: #{convqnet_forward.1} parent=1 // pred_region
      _
    $region37: #{convqnet_forward.1} parent=1 // pred_fallthru
      _
    // Predicated region
    $region38: #{convqnet_forward.1} parent=1 // pred_check
      _
    $region39: #{convqnet_forward.1} parent=1 // pred_check_branch
      %92 = sbr.rel (0) target = $region41
    $region40: #{convqnet_forward.1} parent=1 // pred_region
      %94 = vsyncadd [#allocation11], 0
      %s95 = sshll.u32 %s9, 4
      %s96 = int_to_ptr.hbm [resolvable:$true] %s95
      %s97 = sshll.u32 [#allocation10], 4
      %s98 = int_to_ptr.vmem [resolvable:$true] %s97
      %103 = dma.hbm_to_vmem [thread:$0]  %s96, 1024, %s98, [#allocation11], 64, 64, 4
    $region41: #{convqnet_forward.1} parent=1 // pred_fallthru
      _
    // Predicated region
    $region42: #{convqnet_forward.1} parent=1 // pred_check
      _
    $region43: #{convqnet_forward.1} parent=1 // pred_check_branch
      %105 = sbr.rel (0) target = $region45
    $region44: #{convqnet_forward.1} parent=1 // pred_region
      _
    $region45: #{convqnet_forward.1} parent=1 // pred_fallthru
      _
    // Predicated region
    $region46: #{convqnet_forward.1} parent=1 // pred_check
      _
    $region47: #{convqnet_forward.1} parent=1 // pred_check_branch
      %107 = sbr.rel (0) target = $region49
    $region48: #{convqnet_forward.1} parent=1 // pred_region
      %109 = dma.done [#allocation3], 768
    $region49: #{convqnet_forward.1} parent=1 // pred_fallthru
      _
    // Predicated region
    $region50: #{convqnet_forward.1} parent=1 // pred_check
      _
    $region51: #{convqnet_forward.1} parent=1 // pred_check_branch
      %111 = sbr.rel (0) target = $region53
    $region52: #{convqnet_forward.1} parent=1 // pred_region
      %113 = dma.done [#allocation5], 32768
    $region53: #{convqnet_forward.1} parent=1 // pred_fallthru
      _
    // Predicated region
    $region54: #{convqnet_forward.1} parent=1 // pred_check
      _
    $region55: #{convqnet_forward.1} parent=1 // pred_check_branch
      %115 = sbr.rel (0) target = $region57
    $region56: #{convqnet_forward.1} parent=1 // pred_region
      %117 = dma.done [#allocation5], 16384
    $region57: #{convqnet_forward.1} parent=1 // pred_fallthru
      _
    // Predicated region
    $region58: #{convqnet_forward.1} parent=1 // pred_check
      _
    $region59: #{convqnet_forward.1} parent=1 // pred_check_branch
      %119 = sbr.rel (0) target = $region61
    $region60: #{convqnet_forward.1} parent=1 // pred_region
      %121 = dma.done [#allocation8], 32
    $region61: #{convqnet_forward.1} parent=1 // pred_fallthru
      _
    // Predicated region
    $region62: #{convqnet_forward.1} parent=1 // pred_check
      _
    $region63: #{convqnet_forward.1} parent=1 // pred_check_branch
      %123 = sbr.rel (0) target = $region65
    $region64: #{convqnet_forward.1} parent=1 // pred_region
      %125 = dma.done [#allocation8], 2048
    $region65: #{convqnet_forward.1} parent=1 // pred_fallthru
      _
    // Predicated region
    $region66: #{convqnet_forward.1} parent=1 // pred_check
      _
    $region67: #{convqnet_forward.1} parent=1 // pred_check_branch
      %127 = sbr.rel (0) target = $region69
    $region68: #{convqnet_forward.1} parent=1 // pred_region
      %129 = dma.done [#allocation11], 1024
    $region69: #{convqnet_forward.1} parent=1 // pred_fallthru
      _
    %v131 = vld [vmem:[%s0] sm:$0xff]
    %v132 = vpack.c.bf16 %v131, %v131
    %v133 = vld [vmem:[#allocation2] sm:$0xff]
    %v134 = vld [vmem:[#allocation2 + $0x8] sm:$0xff]
    %v135 = vld [vmem:[#allocation2 + $0x10] sm:$0xff]
    %v136 = vld [vmem:[#allocation2 + $0x18] sm:$0xff]
    %v137 = vld [vmem:[#allocation2 + $0x20] sm:$0x11]
    %v138 = vld [vmem:[#allocation2 + $0x28] sm:$0x11]
    %v139 = vld [vmem:[%s2] sm:$0xf]
    %v141 = vperm.slane %v139, 0
    %v142 = vperm.slane %v139, 1
    %v143 = vperm.slane %v139, 2
    %v144 = vperm.slane %v139, 3
    %v155 = vunpack.c.l.b16 %v133
    %v156 = vunpack.c.h.b16 %v133
    %v157 = vunpack.c.l.b16 %v134
    %v158 = vunpack.c.h.b16 %v134
    %v159 = vunpack.c.l.b16 %v135
    %v160 = vunpack.c.h.b16 %v135
    %v161 = vunpack.c.l.b16 %v136
    %v162 = vunpack.c.h.b16 %v136
    %v163 = vunpack.c.l.b16 %v137
    %v164 = vunpack.c.h.b16 %v137
    %v165 = vunpack.c.l.b16 %v138
    %v166 = vunpack.c.h.b16 %v138
    %v167 = vpack.c.b16 %v159, %v155
    %v168 = vpack.c.b16 %v160, %v156
    %v169 = vpack.c.b16 %v161, %v157
    %v170 = vpack.c.b16 %v162, %v158
    %v171 = vpack.c.b16 %v163, %v163
    %v172 = vpack.c.b16 %v164, %v164
    %v173 = vpack.c.b16 %v165, %v165
    %v174 = vpack.c.b16 %v166, %v166
    %vm179 = vcmask 146432
    %v181 = vsel %vm179, %v132, 0
    %vm183 = vcmask 1040384
    %v185 = vsel %vm183, %v171, 0
    %v188 = vsel %vm183, %v172, 0
    %v191 = vsel %vm183, %v173, 0
    %v194 = vsel %vm183, %v174, 0
    %196 = vmatpush.bf16.msra.mxu0 0
    %197 = vmatpush.bf16.msra.mxu0 0
    %198 = vmatpush.bf16.msra.mxu0 0
    %199 = vmatpush.bf16.msra.mxu0 0
    %200 = vmatpush.bf16.msra.mxu0 0
    %201 = vmatpush.bf16.msra.mxu0 0
    %202 = vmatpush.bf16.msra.mxu0 %v185
    %203 = vmatpush.bf16.msra.mxu0 %v167
    %204 = vmatmul.bf16.gmra.mxu0 %v181
    %v205 = vpop.f32.mrf.mxu0
    %v206 = vadd.f32 %v141, %v205
    %v207 = vpop.f32.mrf.mxu0
    %208 = vdwg.mxu0
    %209 = vmatpush.bf16.msra.mxu0 0
    %210 = vmatpush.bf16.msra.mxu0 0
    %211 = vmatpush.bf16.msra.mxu0 0
    %212 = vmatpush.bf16.msra.mxu0 0
    %213 = vmatpush.bf16.msra.mxu0 0
    %214 = vmatpush.bf16.msra.mxu0 0
    %215 = vmatpush.bf16.msra.mxu0 %v188
    %216 = vmatpush.bf16.msra.mxu0 %v168
    %217 = vmatmul.bf16.gmra.mxu0 %v181
    %v218 = vpop.f32.mrf.mxu0
    %v219 = vadd.f32 %v142, %v218
    %v220 = vpop.f32.mrf.mxu0
    %221 = vdwg.mxu0
    %222 = vmatpush.bf16.msra.mxu0 0
    %223 = vmatpush.bf16.msra.mxu0 0
    %224 = vmatpush.bf16.msra.mxu0 0
    %225 = vmatpush.bf16.msra.mxu0 0
    %226 = vmatpush.bf16.msra.mxu0 0
    %227 = vmatpush.bf16.msra.mxu0 0
    %228 = vmatpush.bf16.msra.mxu0 %v191
    %229 = vmatpush.bf16.msra.mxu0 %v169
    %230 = vmatmul.bf16.gmra.mxu0 %v181
    %v231 = vpop.f32.mrf.mxu0
    %v232 = vadd.f32 %v143, %v231
    %v233 = vpop.f32.mrf.mxu0
    %234 = vdwg.mxu0
    %235 = vmatpush.bf16.msra.mxu0 0
    %236 = vmatpush.bf16.msra.mxu0 0
    %237 = vmatpush.bf16.msra.mxu0 0
    %238 = vmatpush.bf16.msra.mxu0 0
    %239 = vmatpush.bf16.msra.mxu0 0
    %240 = vmatpush.bf16.msra.mxu0 0
    %241 = vmatpush.bf16.msra.mxu0 %v194
    %242 = vmatpush.bf16.msra.mxu0 %v170
    %243 = vmatmul.bf16.gmra.mxu0 %v181
    %v244 = vpop.f32.mrf.mxu0
    %v245 = vadd.f32 %v144, %v244
    %v246 = vpop.f32.mrf.mxu0
    %247 = vdwg.mxu0
    %v248 = vmax.f32 %v206, 0.0
    %v249 = vmax.f32 %v219, 0.0
    %v250 = vmax.f32 %v232, 0.0
    %v251 = vmax.f32 %v245, 0.0
    %v252 = vpack.c.bf16 %v248, %v248
    %v253 = vpack.c.bf16 %v249, %v249
    %v254 = vpack.c.bf16 %v250, %v250
    %v255 = vpack.c.bf16 %v251, %v251
    %v256 = vld [vmem:[#allocation4] sm:$0xff]
    %v257 = vld [vmem:[#allocation4 + $0x8] sm:$0xff]
    %v258 = vld [vmem:[#allocation4 + $0x10] sm:$0xff]
    %v259 = vld [vmem:[#allocation4 + $0x18] sm:$0xff]
    %v260 = vld [vmem:[#allocation4 + $0x20] sm:$0xff]
    %v261 = vld [vmem:[#allocation4 + $0x28] sm:$0xff]
    %v262 = vld [vmem:[#allocation4 + $0x30] sm:$0xff]
    %v263 = vld [vmem:[#allocation4 + $0x38] sm:$0xff]
    %v264 = vld [vmem:[#allocation4 + $0x40] sm:$0xff]
    %v265 = vld [vmem:[#allocation4 + $0x48] sm:$0xff]
    %v266 = vld [vmem:[#allocation4 + $0x50] sm:$0xff]
    %v267 = vld [vmem:[#allocation4 + $0x58] sm:$0xff]
    %v268 = vld [vmem:[#allocation4 + $0x60] sm:$0xff]
    %v269 = vld [vmem:[#allocation4 + $0x68] sm:$0xff]
    %v270 = vld [vmem:[#allocation4 + $0x70] sm:$0xff]
    %v271 = vld [vmem:[#allocation4 + $0x78] sm:$0xff]
    %v272 = vld [vmem:[#allocation4 + $0x80] sm:$0xff]
    %v273 = vld [vmem:[#allocation4 + $0x88] sm:$0xff]
    %v274 = vld [vmem:[#allocation4 + $0x90] sm:$0xff]
    %v275 = vld [vmem:[#allocation4 + $0x98] sm:$0xff]
    %v276 = vld [vmem:[#allocation4 + $0xa0] sm:$0xff]
    %v277 = vld [vmem:[#allocation4 + $0xa8] sm:$0xff]
    %v278 = vld [vmem:[#allocation4 + $0xb0] sm:$0xff]
    %v279 = vld [vmem:[#allocation4 + $0xb8] sm:$0xff]
    %v280 = vld [vmem:[#allocation4 + $0xc0] sm:$0xff]
    %v281 = vld [vmem:[#allocation4 + $0xc8] sm:$0xff]
    %v282 = vld [vmem:[#allocation4 + $0xd0] sm:$0xff]
    %v283 = vld [vmem:[#allocation4 + $0xd8] sm:$0xff]
    %v284 = vld [vmem:[#allocation4 + $0xe0] sm:$0xff]
    %v285 = vld [vmem:[#allocation4 + $0xe8] sm:$0xff]
    %v286 = vld [vmem:[#allocation4 + $0xf0] sm:$0xff]
    %v287 = vld [vmem:[#allocation4 + $0xf8] sm:$0xff]
    %v288 = vld [vmem:[#allocation4 + $0x100] sm:$0xff]
    %v289 = vld [vmem:[#allocation4 + $0x108] sm:$0xff]
    %v290 = vld [vmem:[#allocation4 + $0x110] sm:$0xff]
    %v291 = vld [vmem:[#allocation4 + $0x118] sm:$0xff]
    %v292 = vld [vmem:[#allocation4 + $0x120] sm:$0xff]
    %v293 = vld [vmem:[#allocation4 + $0x128] sm:$0xff]
    %v294 = vld [vmem:[#allocation4 + $0x130] sm:$0xff]
    %v295 = vld [vmem:[#allocation4 + $0x138] sm:$0xff]
    %v296 = vld [vmem:[#allocation4 + $0x140] sm:$0xff]
    %v297 = vld [vmem:[#allocation4 + $0x148] sm:$0xff]
    %v298 = vld [vmem:[#allocation4 + $0x150] sm:$0xff]
    %v299 = vld [vmem:[#allocation4 + $0x158] sm:$0xff]
    %v300 = vld [vmem:[#allocation4 + $0x160] sm:$0xff]
    %v301 = vld [vmem:[#allocation4 + $0x168] sm:$0xff]
    %v302 = vld [vmem:[#allocation4 + $0x170] sm:$0xff]
    %v303 = vld [vmem:[#allocation4 + $0x178] sm:$0xff]
    %v304 = vld [vmem:[#allocation4 + $0x180] sm:$0xff]
    %v305 = vld [vmem:[#allocation4 + $0x188] sm:$0xff]
    %v306 = vld [vmem:[#allocation4 + $0x190] sm:$0xff]
    %v307 = vld [vmem:[#allocation4 + $0x198] sm:$0xff]
    %v308 = vld [vmem:[#allocation4 + $0x1a0] sm:$0xff]
    %v309 = vld [vmem:[#allocation4 + $0x1a8] sm:$0xff]
    %v310 = vld [vmem:[#allocation4 + $0x1b0] sm:$0xff]
    %v311 = vld [vmem:[#allocation4 + $0x1b8] sm:$0xff]
    %v312 = vld [vmem:[#allocation4 + $0x1c0] sm:$0xff]
    %v313 = vld [vmem:[#allocation4 + $0x1c8] sm:$0xff]
    %v314 = vld [vmem:[#allocation4 + $0x1d0] sm:$0xff]
    %v315 = vld [vmem:[#allocation4 + $0x1d8] sm:$0xff]
    %v316 = vld [vmem:[#allocation4 + $0x1e0] sm:$0xff]
    %v317 = vld [vmem:[#allocation4 + $0x1e8] sm:$0xff]
    %v318 = vld [vmem:[#allocation4 + $0x1f0] sm:$0xff]
    %v319 = vld [vmem:[#allocation4 + $0x1f8] sm:$0xff]
    %v320 = vld [vmem:[#allocation4 + $0x200] sm:$0xff]
    %v321 = vld [vmem:[#allocation4 + $0x208] sm:$0xff]
    %v322 = vld [vmem:[#allocation4 + $0x210] sm:$0xff]
    %v323 = vld [vmem:[#allocation4 + $0x218] sm:$0xff]
    %v324 = vld [vmem:[#allocation4 + $0x220] sm:$0xff]
    %v325 = vld [vmem:[#allocation4 + $0x228] sm:$0xff]
    %v326 = vld [vmem:[#allocation4 + $0x230] sm:$0xff]
    %v327 = vld [vmem:[#allocation4 + $0x238] sm:$0xff]
    %v328 = vld [vmem:[#allocation4 + $0x240] sm:$0xff]
    %v329 = vld [vmem:[#allocation4 + $0x248] sm:$0xff]
    %v330 = vld [vmem:[#allocation4 + $0x250] sm:$0xff]
    %v331 = vld [vmem:[#allocation4 + $0x258] sm:$0xff]
    %v332 = vld [vmem:[#allocation4 + $0x260] sm:$0xff]
    %v333 = vld [vmem:[#allocation4 + $0x268] sm:$0xff]
    %v334 = vld [vmem:[#allocation4 + $0x270] sm:$0xff]
    %v335 = vld [vmem:[#allocation4 + $0x278] sm:$0xff]
    %v336 = vld [vmem:[#allocation4 + $0x280] sm:$0xff]
    %v337 = vld [vmem:[#allocation4 + $0x288] sm:$0xff]
    %v338 = vld [vmem:[#allocation4 + $0x290] sm:$0xff]
    %v339 = vld [vmem:[#allocation4 + $0x298] sm:$0xff]
    %v340 = vld [vmem:[#allocation4 + $0x2a0] sm:$0xff]
    %v341 = vld [vmem:[#allocation4 + $0x2a8] sm:$0xff]
    %v342 = vld [vmem:[#allocation4 + $0x2b0] sm:$0xff]
    %v343 = vld [vmem:[#allocation4 + $0x2b8] sm:$0xff]
    %v344 = vld [vmem:[#allocation4 + $0x2c0] sm:$0xff]
    %v345 = vld [vmem:[#allocation4 + $0x2c8] sm:$0xff]
    %v346 = vld [vmem:[#allocation4 + $0x2d0] sm:$0xff]
    %v347 = vld [vmem:[#allocation4 + $0x2d8] sm:$0xff]
    %v348 = vld [vmem:[#allocation4 + $0x2e0] sm:$0xff]
    %v349 = vld [vmem:[#allocation4 + $0x2e8] sm:$0xff]
    %v350 = vld [vmem:[#allocation4 + $0x2f0] sm:$0xff]
    %v351 = vld [vmem:[#allocation4 + $0x2f8] sm:$0xff]
    %v352 = vld [vmem:[#allocation4 + $0x300] sm:$0xff]
    %v353 = vld [vmem:[#allocation4 + $0x308] sm:$0xff]
    %v354 = vld [vmem:[#allocation4 + $0x310] sm:$0xff]
    %v355 = vld [vmem:[#allocation4 + $0x318] sm:$0xff]
    %v356 = vld [vmem:[#allocation4 + $0x320] sm:$0xff]
    %v357 = vld [vmem:[#allocation4 + $0x328] sm:$0xff]
    %v358 = vld [vmem:[#allocation4 + $0x330] sm:$0xff]
    %v359 = vld [vmem:[#allocation4 + $0x338] sm:$0xff]
    %v360 = vld [vmem:[#allocation4 + $0x340] sm:$0xff]
    %v361 = vld [vmem:[#allocation4 + $0x348] sm:$0xff]
    %v362 = vld [vmem:[#allocation4 + $0x350] sm:$0xff]
    %v363 = vld [vmem:[#allocation4 + $0x358] sm:$0xff]
    %v364 = vld [vmem:[#allocation4 + $0x360] sm:$0xff]
    %v365 = vld [vmem:[#allocation4 + $0x368] sm:$0xff]
    %v366 = vld [vmem:[#allocation4 + $0x370] sm:$0xff]
    %v367 = vld [vmem:[#allocation4 + $0x378] sm:$0xff]
    %v368 = vld [vmem:[#allocation4 + $0x380] sm:$0xff]
    %v369 = vld [vmem:[#allocation4 + $0x388] sm:$0xff]
    %v370 = vld [vmem:[#allocation4 + $0x390] sm:$0xff]
    %v371 = vld [vmem:[#allocation4 + $0x398] sm:$0xff]
    %v372 = vld [vmem:[#allocation4 + $0x3a0] sm:$0xff]
    %v373 = vld [vmem:[#allocation4 + $0x3a8] sm:$0xff]
    %v374 = vld [vmem:[#allocation4 + $0x3b0] sm:$0xff]
    %v375 = vld [vmem:[#allocation4 + $0x3b8] sm:$0xff]
    %v376 = vld [vmem:[#allocation4 + $0x3c0] sm:$0xff]
    %v377 = vld [vmem:[#allocation4 + $0x3c8] sm:$0xff]
    %v378 = vld [vmem:[#allocation4 + $0x3d0] sm:$0xff]
    %v379 = vld [vmem:[#allocation4 + $0x3d8] sm:$0xff]
    %v380 = vld [vmem:[#allocation4 + $0x3e0] sm:$0xff]
    %v381 = vld [vmem:[#allocation4 + $0x3e8] sm:$0xff]
    %v382 = vld [vmem:[#allocation4 + $0x3f0] sm:$0xff]
    %v383 = vld [vmem:[#allocation4 + $0x3f8] sm:$0xff]
    %v384 = vld [vmem:[#allocation4 + $0x400] sm:$0xff]
    %v385 = vld [vmem:[#allocation4 + $0x408] sm:$0xff]
    %v386 = vld [vmem:[#allocation4 + $0x410] sm:$0xff]
    %v387 = vld [vmem:[#allocation4 + $0x418] sm:$0xff]
    %v388 = vld [vmem:[#allocation4 + $0x420] sm:$0xff]
    %v389 = vld [vmem:[#allocation4 + $0x428] sm:$0xff]
    %v390 = vld [vmem:[#allocation4 + $0x430] sm:$0xff]
    %v391 = vld [vmem:[#allocation4 + $0x438] sm:$0xff]
    %v392 = vld [vmem:[#allocation4 + $0x440] sm:$0xff]
    %v393 = vld [vmem:[#allocation4 + $0x448] sm:$0xff]
    %v394 = vld [vmem:[#allocation4 + $0x450] sm:$0xff]
    %v395 = vld [vmem:[#allocation4 + $0x458] sm:$0xff]
    %v396 = vld [vmem:[#allocation4 + $0x460] sm:$0xff]
    %v397 = vld [vmem:[#allocation4 + $0x468] sm:$0xff]
    %v398 = vld [vmem:[#allocation4 + $0x470] sm:$0xff]
    %v399 = vld [vmem:[#allocation4 + $0x478] sm:$0xff]
    %v400 = vld [vmem:[#allocation4 + $0x480] sm:$0xff]
    %v401 = vld [vmem:[#allocation4 + $0x488] sm:$0xff]
    %v402 = vld [vmem:[#allocation4 + $0x490] sm:$0xff]
    %v403 = vld [vmem:[#allocation4 + $0x498] sm:$0xff]
    %v404 = vld [vmem:[#allocation4 + $0x4a0] sm:$0xff]
    %v405 = vld [vmem:[#allocation4 + $0x4a8] sm:$0xff]
    %v406 = vld [vmem:[#allocation4 + $0x4b0] sm:$0xff]
    %v407 = vld [vmem:[#allocation4 + $0x4b8] sm:$0xff]
    %v408 = vld [vmem:[#allocation4 + $0x4c0] sm:$0xff]
    %v409 = vld [vmem:[#allocation4 + $0x4c8] sm:$0xff]
    %v410 = vld [vmem:[#allocation4 + $0x4d0] sm:$0xff]
    %v411 = vld [vmem:[#allocation4 + $0x4d8] sm:$0xff]
    %v412 = vld [vmem:[#allocation4 + $0x4e0] sm:$0xff]
    %v413 = vld [vmem:[#allocation4 + $0x4e8] sm:$0xff]
    %v414 = vld [vmem:[#allocation4 + $0x4f0] sm:$0xff]
    %v415 = vld [vmem:[#allocation4 + $0x4f8] sm:$0xff]
    %v416 = vld [vmem:[#allocation4 + $0x500] sm:$0xff]
    %v417 = vld [vmem:[#allocation4 + $0x508] sm:$0xff]
    %v418 = vld [vmem:[#allocation4 + $0x510] sm:$0xff]
    %v419 = vld [vmem:[#allocation4 + $0x518] sm:$0xff]
    %v420 = vld [vmem:[#allocation4 + $0x520] sm:$0xff]
    %v421 = vld [vmem:[#allocation4 + $0x528] sm:$0xff]
    %v422 = vld [vmem:[#allocation4 + $0x530] sm:$0xff]
    %v423 = vld [vmem:[#allocation4 + $0x538] sm:$0xff]
    %v424 = vld [vmem:[#allocation4 + $0x540] sm:$0xff]
    %v425 = vld [vmem:[#allocation4 + $0x548] sm:$0xff]
    %v426 = vld [vmem:[#allocation4 + $0x550] sm:$0xff]
    %v427 = vld [vmem:[#allocation4 + $0x558] sm:$0xff]
    %v428 = vld [vmem:[#allocation4 + $0x560] sm:$0xff]
    %v429 = vld [vmem:[#allocation4 + $0x568] sm:$0xff]
    %v430 = vld [vmem:[#allocation4 + $0x570] sm:$0xff]
    %v431 = vld [vmem:[#allocation4 + $0x578] sm:$0xff]
    %v432 = vld [vmem:[#allocation4 + $0x580] sm:$0xff]
    %v433 = vld [vmem:[#allocation4 + $0x588] sm:$0xff]
    %v434 = vld [vmem:[#allocation4 + $0x590] sm:$0xff]
    %v435 = vld [vmem:[#allocation4 + $0x598] sm:$0xff]
    %v436 = vld [vmem:[#allocation4 + $0x5a0] sm:$0xff]
    %v437 = vld [vmem:[#allocation4 + $0x5a8] sm:$0xff]
    %v438 = vld [vmem:[#allocation4 + $0x5b0] sm:$0xff]
    %v439 = vld [vmem:[#allocation4 + $0x5b8] sm:$0xff]
    %v440 = vld [vmem:[#allocation4 + $0x5c0] sm:$0xff]
    %v441 = vld [vmem:[#allocation4 + $0x5c8] sm:$0xff]
    %v442 = vld [vmem:[#allocation4 + $0x5d0] sm:$0xff]
    %v443 = vld [vmem:[#allocation4 + $0x5d8] sm:$0xff]
    %v444 = vld [vmem:[#allocation4 + $0x5e0] sm:$0xff]
    %v445 = vld [vmem:[#allocation4 + $0x5e8] sm:$0xff]
    %v446 = vld [vmem:[#allocation4 + $0x5f0] sm:$0xff]
    %v447 = vld [vmem:[#allocation4 + $0x5f8] sm:$0xff]
    %v448 = vld [vmem:[#allocation4 + $0x600] sm:$0xff]
    %v449 = vld [vmem:[#allocation4 + $0x608] sm:$0xff]
    %v450 = vld [vmem:[#allocation4 + $0x610] sm:$0xff]
    %v451 = vld [vmem:[#allocation4 + $0x618] sm:$0xff]
    %v452 = vld [vmem:[#allocation4 + $0x620] sm:$0xff]
    %v453 = vld [vmem:[#allocation4 + $0x628] sm:$0xff]
    %v454 = vld [vmem:[#allocation4 + $0x630] sm:$0xff]
    %v455 = vld [vmem:[#allocation4 + $0x638] sm:$0xff]
    %v456 = vld [vmem:[#allocation4 + $0x640] sm:$0xff]
    %v457 = vld [vmem:[#allocation4 + $0x648] sm:$0xff]
    %v458 = vld [vmem:[#allocation4 + $0x650] sm:$0xff]
    %v459 = vld [vmem:[#allocation4 + $0x658] sm:$0xff]
    %v460 = vld [vmem:[#allocation4 + $0x660] sm:$0xff]
    %v461 = vld [vmem:[#allocation4 + $0x668] sm:$0xff]
    %v462 = vld [vmem:[#allocation4 + $0x670] sm:$0xff]
    %v463 = vld [vmem:[#allocation4 + $0x678] sm:$0xff]
    %v464 = vld [vmem:[#allocation4 + $0x680] sm:$0xff]
    %v465 = vld [vmem:[#allocation4 + $0x688] sm:$0xff]
    %v466 = vld [vmem:[#allocation4 + $0x690] sm:$0xff]
    %v467 = vld [vmem:[#allocation4 + $0x698] sm:$0xff]
    %v468 = vld [vmem:[#allocation4 + $0x6a0] sm:$0xff]
    %v469 = vld [vmem:[#allocation4 + $0x6a8] sm:$0xff]
    %v470 = vld [vmem:[#allocation4 + $0x6b0] sm:$0xff]
    %v471 = vld [vmem:[#allocation4 + $0x6b8] sm:$0xff]
    %v472 = vld [vmem:[#allocation4 + $0x6c0] sm:$0xff]
    %v473 = vld [vmem:[#allocation4 + $0x6c8] sm:$0xff]
    %v474 = vld [vmem:[#allocation4 + $0x6d0] sm:$0xff]
    %v475 = vld [vmem:[#allocation4 + $0x6d8] sm:$0xff]
    %v476 = vld [vmem:[#allocation4 + $0x6e0] sm:$0xff]
    %v477 = vld [vmem:[#allocation4 + $0x6e8] sm:$0xff]
    %v478 = vld [vmem:[#allocation4 + $0x6f0] sm:$0xff]
    %v479 = vld [vmem:[#allocation4 + $0x6f8] sm:$0xff]
    %v480 = vld [vmem:[#allocation4 + $0x700] sm:$0xff]
    %v481 = vld [vmem:[#allocation4 + $0x708] sm:$0xff]
    %v482 = vld [vmem:[#allocation4 + $0x710] sm:$0xff]
    %v483 = vld [vmem:[#allocation4 + $0x718] sm:$0xff]
    %v484 = vld [vmem:[#allocation4 + $0x720] sm:$0xff]
    %v485 = vld [vmem:[#allocation4 + $0x728] sm:$0xff]
    %v486 = vld [vmem:[#allocation4 + $0x730] sm:$0xff]
    %v487 = vld [vmem:[#allocation4 + $0x738] sm:$0xff]
    %v488 = vld [vmem:[#allocation4 + $0x740] sm:$0xff]
    %v489 = vld [vmem:[#allocation4 + $0x748] sm:$0xff]
    %v490 = vld [vmem:[#allocation4 + $0x750] sm:$0xff]
    %v491 = vld [vmem:[#allocation4 + $0x758] sm:$0xff]
    %v492 = vld [vmem:[#allocation4 + $0x760] sm:$0xff]
    %v493 = vld [vmem:[#allocation4 + $0x768] sm:$0xff]
    %v494 = vld [vmem:[#allocation4 + $0x770] sm:$0xff]
    %v495 = vld [vmem:[#allocation4 + $0x778] sm:$0xff]
    %v496 = vld [vmem:[#allocation4 + $0x780] sm:$0xff]
    %v497 = vld [vmem:[#allocation4 + $0x788] sm:$0xff]
    %v498 = vld [vmem:[#allocation4 + $0x790] sm:$0xff]
    %v499 = vld [vmem:[#allocation4 + $0x798] sm:$0xff]
    %v500 = vld [vmem:[#allocation4 + $0x7a0] sm:$0xff]
    %v501 = vld [vmem:[#allocation4 + $0x7a8] sm:$0xff]
    %v502 = vld [vmem:[#allocation4 + $0x7b0] sm:$0xff]
    %v503 = vld [vmem:[#allocation4 + $0x7b8] sm:$0xff]
    %v504 = vld [vmem:[#allocation4 + $0x7c0] sm:$0xff]
    %v505 = vld [vmem:[#allocation4 + $0x7c8] sm:$0xff]
    %v506 = vld [vmem:[#allocation4 + $0x7d0] sm:$0xff]
    %v507 = vld [vmem:[#allocation4 + $0x7d8] sm:$0xff]
    %v508 = vld [vmem:[#allocation4 + $0x7e0] sm:$0xff]
    %v509 = vld [vmem:[#allocation4 + $0x7e8] sm:$0xff]
    %v510 = vld [vmem:[#allocation4 + $0x7f0] sm:$0xff]
    %v511 = vld [vmem:[#allocation4 + $0x7f8] sm:$0xff]
    %v512 = vld [vmem:[%s4] sm:$0xff]
    %v514 = vperm.slane %v512, 0
    %v515 = vperm.slane %v512, 1
    %v516 = vperm.slane %v512, 2
    %v517 = vperm.slane %v512, 3
    %v518 = vperm.slane %v512, 4
    %v519 = vperm.slane %v512, 5
    %v520 = vperm.slane %v512, 6
    %v521 = vperm.slane %v512, 7
    %v786 = vunpack.c.l.b16 %v256
    %v787 = vunpack.c.h.b16 %v256
    %v788 = vunpack.c.l.b16 %v257
    %v789 = vunpack.c.h.b16 %v257
    %v790 = vunpack.c.l.b16 %v258
    %v791 = vunpack.c.h.b16 %v258
    %v792 = vunpack.c.l.b16 %v259
    %v793 = vunpack.c.h.b16 %v259
    %v794 = vunpack.c.l.b16 %v260
    %v795 = vunpack.c.h.b16 %v260
    %v796 = vunpack.c.l.b16 %v261
    %v797 = vunpack.c.h.b16 %v261
    %v798 = vunpack.c.l.b16 %v262
    %v799 = vunpack.c.h.b16 %v262
    %v800 = vunpack.c.l.b16 %v263
    %v801 = vunpack.c.h.b16 %v263
    %v802 = vunpack.c.l.b16 %v264
    %v803 = vunpack.c.h.b16 %v264
    %v804 = vunpack.c.l.b16 %v265
    %v805 = vunpack.c.h.b16 %v265
    %v806 = vunpack.c.l.b16 %v266
    %v807 = vunpack.c.h.b16 %v266
    %v808 = vunpack.c.l.b16 %v267
    %v809 = vunpack.c.h.b16 %v267
    %v810 = vunpack.c.l.b16 %v268
    %v811 = vunpack.c.h.b16 %v268
    %v812 = vunpack.c.l.b16 %v269
    %v813 = vunpack.c.h.b16 %v269
    %v814 = vunpack.c.l.b16 %v270
    %v815 = vunpack.c.h.b16 %v270
    %v816 = vunpack.c.l.b16 %v271
    %v817 = vunpack.c.h.b16 %v271
    %v818 = vunpack.c.l.b16 %v272
    %v819 = vunpack.c.h.b16 %v272
    %v820 = vunpack.c.l.b16 %v273
    %v821 = vunpack.c.h.b16 %v273
    %v822 = vunpack.c.l.b16 %v274
    %v823 = vunpack.c.h.b16 %v274
    %v824 = vunpack.c.l.b16 %v275
    %v825 = vunpack.c.h.b16 %v275
    %v826 = vunpack.c.l.b16 %v276
    %v827 = vunpack.c.h.b16 %v276
    %v828 = vunpack.c.l.b16 %v277
    %v829 = vunpack.c.h.b16 %v277
    %v830 = vunpack.c.l.b16 %v278
    %v831 = vunpack.c.h.b16 %v278
    %v832 = vunpack.c.l.b16 %v279
    %v833 = vunpack.c.h.b16 %v279
    %v834 = vunpack.c.l.b16 %v280
    %v835 = vunpack.c.h.b16 %v280
    %v836 = vunpack.c.l.b16 %v281
    %v837 = vunpack.c.h.b16 %v281
    %v838 = vunpack.c.l.b16 %v282
    %v839 = vunpack.c.h.b16 %v282
    %v840 = vunpack.c.l.b16 %v283
    %v841 = vunpack.c.h.b16 %v283
    %v842 = vunpack.c.l.b16 %v284
    %v843 = vunpack.c.h.b16 %v284
    %v844 = vunpack.c.l.b16 %v285
    %v845 = vunpack.c.h.b16 %v285
    %v846 = vunpack.c.l.b16 %v286
    %v847 = vunpack.c.h.b16 %v286
    %v848 = vunpack.c.l.b16 %v287
    %v849 = vunpack.c.h.b16 %v287
    %v850 = vunpack.c.l.b16 %v288
    %v851 = vunpack.c.h.b16 %v288
    %v852 = vunpack.c.l.b16 %v289
    %v853 = vunpack.c.h.b16 %v289
    %v854 = vunpack.c.l.b16 %v290
    %v855 = vunpack.c.h.b16 %v290
    %v856 = vunpack.c.l.b16 %v291
    %v857 = vunpack.c.h.b16 %v291
    %v858 = vunpack.c.l.b16 %v292
    %v859 = vunpack.c.h.b16 %v292
    %v860 = vunpack.c.l.b16 %v293
    %v861 = vunpack.c.h.b16 %v293
    %v862 = vunpack.c.l.b16 %v294
    %v863 = vunpack.c.h.b16 %v294
    %v864 = vunpack.c.l.b16 %v295
    %v865 = vunpack.c.h.b16 %v295
    %v866 = vunpack.c.l.b16 %v296
    %v867 = vunpack.c.h.b16 %v296
    %v868 = vunpack.c.l.b16 %v297
    %v869 = vunpack.c.h.b16 %v297
    %v870 = vunpack.c.l.b16 %v298
    %v871 = vunpack.c.h.b16 %v298
    %v872 = vunpack.c.l.b16 %v299
    %v873 = vunpack.c.h.b16 %v299
    %v874 = vunpack.c.l.b16 %v300
    %v875 = vunpack.c.h.b16 %v300
    %v876 = vunpack.c.l.b16 %v301
    %v877 = vunpack.c.h.b16 %v301
    %v878 = vunpack.c.l.b16 %v302
    %v879 = vunpack.c.h.b16 %v302
    %v880 = vunpack.c.l.b16 %v303
    %v881 = vunpack.c.h.b16 %v303
    %v882 = vunpack.c.l.b16 %v304
    %v883 = vunpack.c.h.b16 %v304
    %v884 = vunpack.c.l.b16 %v305
    %v885 = vunpack.c.h.b16 %v305
    %v886 = vunpack.c.l.b16 %v306
    %v887 = vunpack.c.h.b16 %v306
    %v888 = vunpack.c.l.b16 %v307
    %v889 = vunpack.c.h.b16 %v307
    %v890 = vunpack.c.l.b16 %v308
    %v891 = vunpack.c.h.b16 %v308
    %v892 = vunpack.c.l.b16 %v309
    %v893 = vunpack.c.h.b16 %v309
    %v894 = vunpack.c.l.b16 %v310
    %v895 = vunpack.c.h.b16 %v310
    %v896 = vunpack.c.l.b16 %v311
    %v897 = vunpack.c.h.b16 %v311
    %v898 = vunpack.c.l.b16 %v312
    %v899 = vunpack.c.h.b16 %v312
    %v900 = vunpack.c.l.b16 %v313
    %v901 = vunpack.c.h.b16 %v313
    %v902 = vunpack.c.l.b16 %v314
    %v903 = vunpack.c.h.b16 %v314
    %v904 = vunpack.c.l.b16 %v315
    %v905 = vunpack.c.h.b16 %v315
    %v906 = vunpack.c.l.b16 %v316
    %v907 = vunpack.c.h.b16 %v316
    %v908 = vunpack.c.l.b16 %v317
    %v909 = vunpack.c.h.b16 %v317
    %v910 = vunpack.c.l.b16 %v318
    %v911 = vunpack.c.h.b16 %v318
    %v912 = vunpack.c.l.b16 %v319
    %v913 = vunpack.c.h.b16 %v319
    %v914 = vunpack.c.l.b16 %v320
    %v915 = vunpack.c.h.b16 %v320
    %v916 = vunpack.c.l.b16 %v321
    %v917 = vunpack.c.h.b16 %v321
    %v918 = vunpack.c.l.b16 %v322
    %v919 = vunpack.c.h.b16 %v322
    %v920 = vunpack.c.l.b16 %v323
    %v921 = vunpack.c.h.b16 %v323
    %v922 = vunpack.c.l.b16 %v324
    %v923 = vunpack.c.h.b16 %v324
    %v924 = vunpack.c.l.b16 %v325
    %v925 = vunpack.c.h.b16 %v325
    %v926 = vunpack.c.l.b16 %v326
    %v927 = vunpack.c.h.b16 %v326
    %v928 = vunpack.c.l.b16 %v327
    %v929 = vunpack.c.h.b16 %v327
    %v930 = vunpack.c.l.b16 %v328
    %v931 = vunpack.c.h.b16 %v328
    %v932 = vunpack.c.l.b16 %v329
    %v933 = vunpack.c.h.b16 %v329
    %v934 = vunpack.c.l.b16 %v330
    %v935 = vunpack.c.h.b16 %v330
    %v936 = vunpack.c.l.b16 %v331
    %v937 = vunpack.c.h.b16 %v331
    %v938 = vunpack.c.l.b16 %v332
    %v939 = vunpack.c.h.b16 %v332
    %v940 = vunpack.c.l.b16 %v333
    %v941 = vunpack.c.h.b16 %v333
    %v942 = vunpack.c.l.b16 %v334
    %v943 = vunpack.c.h.b16 %v334
    %v944 = vunpack.c.l.b16 %v335
    %v945 = vunpack.c.h.b16 %v335
    %v946 = vunpack.c.l.b16 %v336
    %v947 = vunpack.c.h.b16 %v336
    %v948 = vunpack.c.l.b16 %v337
    %v949 = vunpack.c.h.b16 %v337
    %v950 = vunpack.c.l.b16 %v338
    %v951 = vunpack.c.h.b16 %v338
    %v952 = vunpack.c.l.b16 %v339
    %v953 = vunpack.c.h.b16 %v339
    %v954 = vunpack.c.l.b16 %v340
    %v955 = vunpack.c.h.b16 %v340
    %v956 = vunpack.c.l.b16 %v341
    %v957 = vunpack.c.h.b16 %v341
    %v958 = vunpack.c.l.b16 %v342
    %v959 = vunpack.c.h.b16 %v342
    %v960 = vunpack.c.l.b16 %v343
    %v961 = vunpack.c.h.b16 %v343
    %v962 = vunpack.c.l.b16 %v344
    %v963 = vunpack.c.h.b16 %v344
    %v964 = vunpack.c.l.b16 %v345
    %v965 = vunpack.c.h.b16 %v345
    %v966 = vunpack.c.l.b16 %v346
    %v967 = vunpack.c.h.b16 %v346
    %v968 = vunpack.c.l.b16 %v347
    %v969 = vunpack.c.h.b16 %v347
    %v970 = vunpack.c.l.b16 %v348
    %v971 = vunpack.c.h.b16 %v348
    %v972 = vunpack.c.l.b16 %v349
    %v973 = vunpack.c.h.b16 %v349
    %v974 = vunpack.c.l.b16 %v350
    %v975 = vunpack.c.h.b16 %v350
    %v976 = vunpack.c.l.b16 %v351
    %v977 = vunpack.c.h.b16 %v351
    %v978 = vunpack.c.l.b16 %v352
    %v979 = vunpack.c.h.b16 %v352
    %v980 = vunpack.c.l.b16 %v353
    %v981 = vunpack.c.h.b16 %v353
    %v982 = vunpack.c.l.b16 %v354
    %v983 = vunpack.c.h.b16 %v354
    %v984 = vunpack.c.l.b16 %v355
    %v985 = vunpack.c.h.b16 %v355
    %v986 = vunpack.c.l.b16 %v356
    %v987 = vunpack.c.h.b16 %v356
    %v988 = vunpack.c.l.b16 %v357
    %v989 = vunpack.c.h.b16 %v357
    %v990 = vunpack.c.l.b16 %v358
    %v991 = vunpack.c.h.b16 %v358
    %v992 = vunpack.c.l.b16 %v359
    %v993 = vunpack.c.h.b16 %v359
    %v994 = vunpack.c.l.b16 %v360
    %v995 = vunpack.c.h.b16 %v360
    %v996 = vunpack.c.l.b16 %v361
    %v997 = vunpack.c.h.b16 %v361
    %v998 = vunpack.c.l.b16 %v362
    %v999 = vunpack.c.h.b16 %v362
    %v1000 = vunpack.c.l.b16 %v363
    %v1001 = vunpack.c.h.b16 %v363
    %v1002 = vunpack.c.l.b16 %v364
    %v1003 = vunpack.c.h.b16 %v364
    %v1004 = vunpack.c.l.b16 %v365
    %v1005 = vunpack.c.h.b16 %v365
    %v1006 = vunpack.c.l.b16 %v366
    %v1007 = vunpack.c.h.b16 %v366
    %v1008 = vunpack.c.l.b16 %v367
    %v1009 = vunpack.c.h.b16 %v367
    %v1010 = vunpack.c.l.b16 %v368
    %v1011 = vunpack.c.h.b16 %v368
    %v1012 = vunpack.c.l.b16 %v369
    %v1013 = vunpack.c.h.b16 %v369
    %v1014 = vunpack.c.l.b16 %v370
    %v1015 = vunpack.c.h.b16 %v370
    %v1016 = vunpack.c.l.b16 %v371
    %v1017 = vunpack.c.h.b16 %v371
    %v1018 = vunpack.c.l.b16 %v372
    %v1019 = vunpack.c.h.b16 %v372
    %v1020 = vunpack.c.l.b16 %v373
    %v1021 = vunpack.c.h.b16 %v373
    %v1022 = vunpack.c.l.b16 %v374
    %v1023 = vunpack.c.h.b16 %v374
    %v1024 = vunpack.c.l.b16 %v375
    %v1025 = vunpack.c.h.b16 %v375
    %v1026 = vunpack.c.l.b16 %v376
    %v1027 = vunpack.c.h.b16 %v376
    %v1028 = vunpack.c.l.b16 %v377
    %v1029 = vunpack.c.h.b16 %v377
    %v1030 = vunpack.c.l.b16 %v378
    %v1031 = vunpack.c.h.b16 %v378
    %v1032 = vunpack.c.l.b16 %v379
    %v1033 = vunpack.c.h.b16 %v379
    %v1034 = vunpack.c.l.b16 %v380
    %v1035 = vunpack.c.h.b16 %v380
    %v1036 = vunpack.c.l.b16 %v381
    %v1037 = vunpack.c.h.b16 %v381
    %v1038 = vunpack.c.l.b16 %v382
    %v1039 = vunpack.c.h.b16 %v382
    %v1040 = vunpack.c.l.b16 %v383
    %v1041 = vunpack.c.h.b16 %v383
    %v1042 = vunpack.c.l.b16 %v384
    %v1043 = vunpack.c.h.b16 %v384
    %v1044 = vunpack.c.l.b16 %v385
    %v1045 = vunpack.c.h.b16 %v385
    %v1046 = vunpack.c.l.b16 %v386
    %v1047 = vunpack.c.h.b16 %v386
    %v1048 = vunpack.c.l.b16 %v387
    %v1049 = vunpack.c.h.b16 %v387
    %v1050 = vunpack.c.l.b16 %v388
    %v1051 = vunpack.c.h.b16 %v388
    %v1052 = vunpack.c.l.b16 %v389
    %v1053 = vunpack.c.h.b16 %v389
    %v1054 = vunpack.c.l.b16 %v390
    %v1055 = vunpack.c.h.b16 %v390
    %v1056 = vunpack.c.l.b16 %v391
    %v1057 = vunpack.c.h.b16 %v391
    %v1058 = vunpack.c.l.b16 %v392
    %v1059 = vunpack.c.h.b16 %v392
    %v1060 = vunpack.c.l.b16 %v393
    %v1061 = vunpack.c.h.b16 %v393
    %v1062 = vunpack.c.l.b16 %v394
    %v1063 = vunpack.c.h.b16 %v394
    %v1064 = vunpack.c.l.b16 %v395
    %v1065 = vunpack.c.h.b16 %v395
    %v1066 = vunpack.c.l.b16 %v396
    %v1067 = vunpack.c.h.b16 %v396
    %v1068 = vunpack.c.l.b16 %v397
    %v1069 = vunpack.c.h.b16 %v397
    %v1070 = vunpack.c.l.b16 %v398
    %v1071 = vunpack.c.h.b16 %v398
    %v1072 = vunpack.c.l.b16 %v399
    %v1073 = vunpack.c.h.b16 %v399
    %v1074 = vunpack.c.l.b16 %v400
    %v1075 = vunpack.c.h.b16 %v400
    %v1076 = vunpack.c.l.b16 %v401
    %v1077 = vunpack.c.h.b16 %v401
    %v1078 = vunpack.c.l.b16 %v402
    %v1079 = vunpack.c.h.b16 %v402
    %v1080 = vunpack.c.l.b16 %v403
    %v1081 = vunpack.c.h.b16 %v403
    %v1082 = vunpack.c.l.b16 %v404
    %v1083 = vunpack.c.h.b16 %v404
    %v1084 = vunpack.c.l.b16 %v405
    %v1085 = vunpack.c.h.b16 %v405
    %v1086 = vunpack.c.l.b16 %v406
    %v1087 = vunpack.c.h.b16 %v406
    %v1088 = vunpack.c.l.b16 %v407
    %v1089 = vunpack.c.h.b16 %v407
    %v1090 = vunpack.c.l.b16 %v408
    %v1091 = vunpack.c.h.b16 %v408
    %v1092 = vunpack.c.l.b16 %v409
    %v1093 = vunpack.c.h.b16 %v409
    %v1094 = vunpack.c.l.b16 %v410
    %v1095 = vunpack.c.h.b16 %v410
    %v1096 = vunpack.c.l.b16 %v411
    %v1097 = vunpack.c.h.b16 %v411
    %v1098 = vunpack.c.l.b16 %v412
    %v1099 = vunpack.c.h.b16 %v412
    %v1100 = vunpack.c.l.b16 %v413
    %v1101 = vunpack.c.h.b16 %v413
    %v1102 = vunpack.c.l.b16 %v414
    %v1103 = vunpack.c.h.b16 %v414
    %v1104 = vunpack.c.l.b16 %v415
    %v1105 = vunpack.c.h.b16 %v415
    %v1106 = vunpack.c.l.b16 %v416
    %v1107 = vunpack.c.h.b16 %v416
    %v1108 = vunpack.c.l.b16 %v417
    %v1109 = vunpack.c.h.b16 %v417
    %v1110 = vunpack.c.l.b16 %v418
    %v1111 = vunpack.c.h.b16 %v418
    %v1112 = vunpack.c.l.b16 %v419
    %v1113 = vunpack.c.h.b16 %v419
    %v1114 = vunpack.c.l.b16 %v420
    %v1115 = vunpack.c.h.b16 %v420
    %v1116 = vunpack.c.l.b16 %v421
    %v1117 = vunpack.c.h.b16 %v421
    %v1118 = vunpack.c.l.b16 %v422
    %v1119 = vunpack.c.h.b16 %v422
    %v1120 = vunpack.c.l.b16 %v423
    %v1121 = vunpack.c.h.b16 %v423
    %v1122 = vunpack.c.l.b16 %v424
    %v1123 = vunpack.c.h.b16 %v424
    %v1124 = vunpack.c.l.b16 %v425
    %v1125 = vunpack.c.h.b16 %v425
    %v1126 = vunpack.c.l.b16 %v426
    %v1127 = vunpack.c.h.b16 %v426
    %v1128 = vunpack.c.l.b16 %v427
    %v1129 = vunpack.c.h.b16 %v427
    %v1130 = vunpack.c.l.b16 %v428
    %v1131 = vunpack.c.h.b16 %v428
    %v1132 = vunpack.c.l.b16 %v429
    %v1133 = vunpack.c.h.b16 %v429
    %v1134 = vunpack.c.l.b16 %v430
    %v1135 = vunpack.c.h.b16 %v430
    %v1136 = vunpack.c.l.b16 %v431
    %v1137 = vunpack.c.h.b16 %v431
    %v1138 = vunpack.c.l.b16 %v432
    %v1139 = vunpack.c.h.b16 %v432
    %v1140 = vunpack.c.l.b16 %v433
    %v1141 = vunpack.c.h.b16 %v433
    %v1142 = vunpack.c.l.b16 %v434
    %v1143 = vunpack.c.h.b16 %v434
    %v1144 = vunpack.c.l.b16 %v435
    %v1145 = vunpack.c.h.b16 %v435
    %v1146 = vunpack.c.l.b16 %v436
    %v1147 = vunpack.c.h.b16 %v436
    %v1148 = vunpack.c.l.b16 %v437
    %v1149 = vunpack.c.h.b16 %v437
    %v1150 = vunpack.c.l.b16 %v438
    %v1151 = vunpack.c.h.b16 %v438
    %v1152 = vunpack.c.l.b16 %v439
    %v1153 = vunpack.c.h.b16 %v439
    %v1154 = vunpack.c.l.b16 %v440
    %v1155 = vunpack.c.h.b16 %v440
    %v1156 = vunpack.c.l.b16 %v441
    %v1157 = vunpack.c.h.b16 %v441
    %v1158 = vunpack.c.l.b16 %v442
    %v1159 = vunpack.c.h.b16 %v442
    %v1160 = vunpack.c.l.b16 %v443
    %v1161 = vunpack.c.h.b16 %v443
    %v1162 = vunpack.c.l.b16 %v444
    %v1163 = vunpack.c.h.b16 %v444
    %v1164 = vunpack.c.l.b16 %v445
    %v1165 = vunpack.c.h.b16 %v445
    %v1166 = vunpack.c.l.b16 %v446
    %v1167 = vunpack.c.h.b16 %v446
    %v1168 = vunpack.c.l.b16 %v447
    %v1169 = vunpack.c.h.b16 %v447
    %v1170 = vunpack.c.l.b16 %v448
    %v1171 = vunpack.c.h.b16 %v448
    %v1172 = vunpack.c.l.b16 %v449
    %v1173 = vunpack.c.h.b16 %v449
    %v1174 = vunpack.c.l.b16 %v450
    %v1175 = vunpack.c.h.b16 %v450
    %v1176 = vunpack.c.l.b16 %v451
    %v1177 = vunpack.c.h.b16 %v451
    %v1178 = vunpack.c.l.b16 %v452
    %v1179 = vunpack.c.h.b16 %v452
    %v1180 = vunpack.c.l.b16 %v453
    %v1181 = vunpack.c.h.b16 %v453
    %v1182 = vunpack.c.l.b16 %v454
    %v1183 = vunpack.c.h.b16 %v454
    %v1184 = vunpack.c.l.b16 %v455
    %v1185 = vunpack.c.h.b16 %v455
    %v1186 = vunpack.c.l.b16 %v456
    %v1187 = vunpack.c.h.b16 %v456
    %v1188 = vunpack.c.l.b16 %v457
    %v1189 = vunpack.c.h.b16 %v457
    %v1190 = vunpack.c.l.b16 %v458
    %v1191 = vunpack.c.h.b16 %v458
    %v1192 = vunpack.c.l.b16 %v459
    %v1193 = vunpack.c.h.b16 %v459
    %v1194 = vunpack.c.l.b16 %v460
    %v1195 = vunpack.c.h.b16 %v460
    %v1196 = vunpack.c.l.b16 %v461
    %v1197 = vunpack.c.h.b16 %v461
    %v1198 = vunpack.c.l.b16 %v462
    %v1199 = vunpack.c.h.b16 %v462
    %v1200 = vunpack.c.l.b16 %v463
    %v1201 = vunpack.c.h.b16 %v463
    %v1202 = vunpack.c.l.b16 %v464
    %v1203 = vunpack.c.h.b16 %v464
    %v1204 = vunpack.c.l.b16 %v465
    %v1205 = vunpack.c.h.b16 %v465
    %v1206 = vunpack.c.l.b16 %v466
    %v1207 = vunpack.c.h.b16 %v466
    %v1208 = vunpack.c.l.b16 %v467
    %v1209 = vunpack.c.h.b16 %v467
    %v1210 = vunpack.c.l.b16 %v468
    %v1211 = vunpack.c.h.b16 %v468
    %v1212 = vunpack.c.l.b16 %v469
    %v1213 = vunpack.c.h.b16 %v469
    %v1214 = vunpack.c.l.b16 %v470
    %v1215 = vunpack.c.h.b16 %v470
    %v1216 = vunpack.c.l.b16 %v471
    %v1217 = vunpack.c.h.b16 %v471
    %v1218 = vunpack.c.l.b16 %v472
    %v1219 = vunpack.c.h.b16 %v472
    %v1220 = vunpack.c.l.b16 %v473
    %v1221 = vunpack.c.h.b16 %v473
    %v1222 = vunpack.c.l.b16 %v474
    %v1223 = vunpack.c.h.b16 %v474
    %v1224 = vunpack.c.l.b16 %v475
    %v1225 = vunpack.c.h.b16 %v475
    %v1226 = vunpack.c.l.b16 %v476
    %v1227 = vunpack.c.h.b16 %v476
    %v1228 = vunpack.c.l.b16 %v477
    %v1229 = vunpack.c.h.b16 %v477
    %v1230 = vunpack.c.l.b16 %v478
    %v1231 = vunpack.c.h.b16 %v478
    %v1232 = vunpack.c.l.b16 %v479
    %v1233 = vunpack.c.h.b16 %v479
    %v1234 = vunpack.c.l.b16 %v480
    %v1235 = vunpack.c.h.b16 %v480
    %v1236 = vunpack.c.l.b16 %v481
    %v1237 = vunpack.c.h.b16 %v481
    %v1238 = vunpack.c.l.b16 %v482
    %v1239 = vunpack.c.h.b16 %v482
    %v1240 = vunpack.c.l.b16 %v483
    %v1241 = vunpack.c.h.b16 %v483
    %v1242 = vunpack.c.l.b16 %v484
    %v1243 = vunpack.c.h.b16 %v484
    %v1244 = vunpack.c.l.b16 %v485
    %v1245 = vunpack.c.h.b16 %v485
    %v1246 = vunpack.c.l.b16 %v486
    %v1247 = vunpack.c.h.b16 %v486
    %v1248 = vunpack.c.l.b16 %v487
    %v1249 = vunpack.c.h.b16 %v487
    %v1250 = vunpack.c.l.b16 %v488
    %v1251 = vunpack.c.h.b16 %v488
    %v1252 = vunpack.c.l.b16 %v489
    %v1253 = vunpack.c.h.b16 %v489
    %v1254 = vunpack.c.l.b16 %v490
    %v1255 = vunpack.c.h.b16 %v490
    %v1256 = vunpack.c.l.b16 %v491
    %v1257 = vunpack.c.h.b16 %v491
    %v1258 = vunpack.c.l.b16 %v492
    %v1259 = vunpack.c.h.b16 %v492
    %v1260 = vunpack.c.l.b16 %v493
    %v1261 = vunpack.c.h.b16 %v493
    %v1262 = vunpack.c.l.b16 %v494
    %v1263 = vunpack.c.h.b16 %v494
    %v1264 = vunpack.c.l.b16 %v495
    %v1265 = vunpack.c.h.b16 %v495
    %v1266 = vunpack.c.l.b16 %v496
    %v1267 = vunpack.c.h.b16 %v496
    %v1268 = vunpack.c.l.b16 %v497
    %v1269 = vunpack.c.h.b16 %v497
    %v1270 = vunpack.c.l.b16 %v498
    %v1271 = vunpack.c.h.b16 %v498
    %v1272 = vunpack.c.l.b16 %v499
    %v1273 = vunpack.c.h.b16 %v499
    %v1274 = vunpack.c.l.b16 %v500
    %v1275 = vunpack.c.h.b16 %v500
    %v1276 = vunpack.c.l.b16 %v501
    %v1277 = vunpack.c.h.b16 %v501
    %v1278 = vunpack.c.l.b16 %v502
    %v1279 = vunpack.c.h.b16 %v502
    %v1280 = vunpack.c.l.b16 %v503
    %v1281 = vunpack.c.h.b16 %v503
    %v1282 = vunpack.c.l.b16 %v504
    %v1283 = vunpack.c.h.b16 %v504
    %v1284 = vunpack.c.l.b16 %v505
    %v1285 = vunpack.c.h.b16 %v505
    %v1286 = vunpack.c.l.b16 %v506
    %v1287 = vunpack.c.h.b16 %v506
    %v1288 = vunpack.c.l.b16 %v507
    %v1289 = vunpack.c.h.b16 %v507
    %v1290 = vunpack.c.l.b16 %v508
    %v1291 = vunpack.c.h.b16 %v508
    %v1292 = vunpack.c.l.b16 %v509
    %v1293 = vunpack.c.h.b16 %v509
    %v1294 = vunpack.c.l.b16 %v510
    %v1295 = vunpack.c.h.b16 %v510
    %v1296 = vunpack.c.l.b16 %v511
    %v1297 = vunpack.c.h.b16 %v511
    %v1298 = vpack.c.b16 %v794, %v786
    %v1299 = vpack.c.b16 %v795, %v787
    %v1300 = vpack.c.b16 %v796, %v788
    %v1301 = vpack.c.b16 %v797, %v789
    %v1302 = vpack.c.b16 %v798, %v790
    %v1303 = vpack.c.b16 %v799, %v791
    %v1304 = vpack.c.b16 %v800, %v792
    %v1305 = vpack.c.b16 %v801, %v793
    %v1306 = vpack.c.b16 %v810, %v802
    %v1307 = vpack.c.b16 %v811, %v803
    %v1308 = vpack.c.b16 %v812, %v804
    %v1309 = vpack.c.b16 %v813, %v805
    %v1310 = vpack.c.b16 %v814, %v806
    %v1311 = vpack.c.b16 %v815, %v807
    %v1312 = vpack.c.b16 %v816, %v808
    %v1313 = vpack.c.b16 %v817, %v809
    %v1314 = vpack.c.b16 %v826, %v818
    %v1315 = vpack.c.b16 %v827, %v819
    %v1316 = vpack.c.b16 %v828, %v820
    %v1317 = vpack.c.b16 %v829, %v821
    %v1318 = vpack.c.b16 %v830, %v822
    %v1319 = vpack.c.b16 %v831, %v823
    %v1320 = vpack.c.b16 %v832, %v824
    %v1321 = vpack.c.b16 %v833, %v825
    %v1322 = vpack.c.b16 %v842, %v834
    %v1323 = vpack.c.b16 %v843, %v835
    %v1324 = vpack.c.b16 %v844, %v836
    %v1325 = vpack.c.b16 %v845, %v837
    %v1326 = vpack.c.b16 %v846, %v838
    %v1327 = vpack.c.b16 %v847, %v839
    %v1328 = vpack.c.b16 %v848, %v840
    %v1329 = vpack.c.b16 %v849, %v841
    %v1330 = vpack.c.b16 %v858, %v850
    %v1331 = vpack.c.b16 %v859, %v851
    %v1332 = vpack.c.b16 %v860, %v852
    %v1333 = vpack.c.b16 %v861, %v853
    %v1334 = vpack.c.b16 %v862, %v854
    %v1335 = vpack.c.b16 %v863, %v855
    %v1336 = vpack.c.b16 %v864, %v856
    %v1337 = vpack.c.b16 %v865, %v857
    %v1338 = vpack.c.b16 %v874, %v866
    %v1339 = vpack.c.b16 %v875, %v867
    %v1340 = vpack.c.b16 %v876, %v868
    %v1341 = vpack.c.b16 %v877, %v869
    %v1342 = vpack.c.b16 %v878, %v870
    %v1343 = vpack.c.b16 %v879, %v871
    %v1344 = vpack.c.b16 %v880, %v872
    %v1345 = vpack.c.b16 %v881, %v873
    %v1346 = vpack.c.b16 %v890, %v882
    %v1347 = vpack.c.b16 %v891, %v883
    %v1348 = vpack.c.b16 %v892, %v884
    %v1349 = vpack.c.b16 %v893, %v885
    %v1350 = vpack.c.b16 %v894, %v886
    %v1351 = vpack.c.b16 %v895, %v887
    %v1352 = vpack.c.b16 %v896, %v888
    %v1353 = vpack.c.b16 %v897, %v889
    %v1354 = vpack.c.b16 %v906, %v898
    %v1355 = vpack.c.b16 %v907, %v899
    %v1356 = vpack.c.b16 %v908, %v900
    %v1357 = vpack.c.b16 %v909, %v901
    %v1358 = vpack.c.b16 %v910, %v902
    %v1359 = vpack.c.b16 %v911, %v903
    %v1360 = vpack.c.b16 %v912, %v904
    %v1361 = vpack.c.b16 %v913, %v905
    %v1362 = vpack.c.b16 %v922, %v914
    %v1363 = vpack.c.b16 %v923, %v915
    %v1364 = vpack.c.b16 %v924, %v916
    %v1365 = vpack.c.b16 %v925, %v917
    %v1366 = vpack.c.b16 %v926, %v918
    %v1367 = vpack.c.b16 %v927, %v919
    %v1368 = vpack.c.b16 %v928, %v920
    %v1369 = vpack.c.b16 %v929, %v921
    %v1370 = vpack.c.b16 %v938, %v930
    %v1371 = vpack.c.b16 %v939, %v931
    %v1372 = vpack.c.b16 %v940, %v932
    %v1373 = vpack.c.b16 %v941, %v933
    %v1374 = vpack.c.b16 %v942, %v934
    %v1375 = vpack.c.b16 %v943, %v935
    %v1376 = vpack.c.b16 %v944, %v936
    %v1377 = vpack.c.b16 %v945, %v937
    %v1378 = vpack.c.b16 %v954, %v946
    %v1379 = vpack.c.b16 %v955, %v947
    %v1380 = vpack.c.b16 %v956, %v948
    %v1381 = vpack.c.b16 %v957, %v949
    %v1382 = vpack.c.b16 %v958, %v950
    %v1383 = vpack.c.b16 %v959, %v951
    %v1384 = vpack.c.b16 %v960, %v952
    %v1385 = vpack.c.b16 %v961, %v953
    %v1386 = vpack.c.b16 %v970, %v962
    %v1387 = vpack.c.b16 %v971, %v963
    %v1388 = vpack.c.b16 %v972, %v964
    %v1389 = vpack.c.b16 %v973, %v965
    %v1390 = vpack.c.b16 %v974, %v966
    %v1391 = vpack.c.b16 %v975, %v967
    %v1392 = vpack.c.b16 %v976, %v968
    %v1393 = vpack.c.b16 %v977, %v969
    %v1394 = vpack.c.b16 %v986, %v978
    %v1395 = vpack.c.b16 %v987, %v979
    %v1396 = vpack.c.b16 %v988, %v980
    %v1397 = vpack.c.b16 %v989, %v981
    %v1398 = vpack.c.b16 %v990, %v982
    %v1399 = vpack.c.b16 %v991, %v983
    %v1400 = vpack.c.b16 %v992, %v984
    %v1401 = vpack.c.b16 %v993, %v985
    %v1402 = vpack.c.b16 %v1002, %v994
    %v1403 = vpack.c.b16 %v1003, %v995
    %v1404 = vpack.c.b16 %v1004, %v996
    %v1405 = vpack.c.b16 %v1005, %v997
    %v1406 = vpack.c.b16 %v1006, %v998
    %v1407 = vpack.c.b16 %v1007, %v999
    %v1408 = vpack.c.b16 %v1008, %v1000
    %v1409 = vpack.c.b16 %v1009, %v1001
    %v1410 = vpack.c.b16 %v1018, %v1010
    %v1411 = vpack.c.b16 %v1019, %v1011
    %v1412 = vpack.c.b16 %v1020, %v1012
    %v1413 = vpack.c.b16 %v1021, %v1013
    %v1414 = vpack.c.b16 %v1022, %v1014
    %v1415 = vpack.c.b16 %v1023, %v1015
    %v1416 = vpack.c.b16 %v1024, %v1016
    %v1417 = vpack.c.b16 %v1025, %v1017
    %v1418 = vpack.c.b16 %v1034, %v1026
    %v1419 = vpack.c.b16 %v1035, %v1027
    %v1420 = vpack.c.b16 %v1036, %v1028
    %v1421 = vpack.c.b16 %v1037, %v1029
    %v1422 = vpack.c.b16 %v1038, %v1030
    %v1423 = vpack.c.b16 %v1039, %v1031
    %v1424 = vpack.c.b16 %v1040, %v1032
    %v1425 = vpack.c.b16 %v1041, %v1033
    %v1426 = vpack.c.b16 %v1050, %v1042
    %v1427 = vpack.c.b16 %v1051, %v1043
    %v1428 = vpack.c.b16 %v1052, %v1044
    %v1429 = vpack.c.b16 %v1053, %v1045
    %v1430 = vpack.c.b16 %v1054, %v1046
    %v1431 = vpack.c.b16 %v1055, %v1047
    %v1432 = vpack.c.b16 %v1056, %v1048
    %v1433 = vpack.c.b16 %v1057, %v1049
    %v1434 = vpack.c.b16 %v1066, %v1058
    %v1435 = vpack.c.b16 %v1067, %v1059
    %v1436 = vpack.c.b16 %v1068, %v1060
    %v1437 = vpack.c.b16 %v1069, %v1061
    %v1438 = vpack.c.b16 %v1070, %v1062
    %v1439 = vpack.c.b16 %v1071, %v1063
    %v1440 = vpack.c.b16 %v1072, %v1064
    %v1441 = vpack.c.b16 %v1073, %v1065
    %v1442 = vpack.c.b16 %v1082, %v1074
    %v1443 = vpack.c.b16 %v1083, %v1075
    %v1444 = vpack.c.b16 %v1084, %v1076
    %v1445 = vpack.c.b16 %v1085, %v1077
    %v1446 = vpack.c.b16 %v1086, %v1078
    %v1447 = vpack.c.b16 %v1087, %v1079
    %v1448 = vpack.c.b16 %v1088, %v1080
    %v1449 = vpack.c.b16 %v1089, %v1081
    %v1450 = vpack.c.b16 %v1098, %v1090
    %v1451 = vpack.c.b16 %v1099, %v1091
    %v1452 = vpack.c.b16 %v1100, %v1092
    %v1453 = vpack.c.b16 %v1101, %v1093
    %v1454 = vpack.c.b16 %v1102, %v1094
    %v1455 = vpack.c.b16 %v1103, %v1095
    %v1456 = vpack.c.b16 %v1104, %v1096
    %v1457 = vpack.c.b16 %v1105, %v1097
    %v1458 = vpack.c.b16 %v1114, %v1106
    %v1459 = vpack.c.b16 %v1115, %v1107
    %v1460 = vpack.c.b16 %v1116, %v1108
    %v1461 = vpack.c.b16 %v1117, %v1109
    %v1462 = vpack.c.b16 %v1118, %v1110
    %v1463 = vpack.c.b16 %v1119, %v1111
    %v1464 = vpack.c.b16 %v1120, %v1112
    %v1465 = vpack.c.b16 %v1121, %v1113
    %v1466 = vpack.c.b16 %v1130, %v1122
    %v1467 = vpack.c.b16 %v1131, %v1123
    %v1468 = vpack.c.b16 %v1132, %v1124
    %v1469 = vpack.c.b16 %v1133, %v1125
    %v1470 = vpack.c.b16 %v1134, %v1126
    %v1471 = vpack.c.b16 %v1135, %v1127
    %v1472 = vpack.c.b16 %v1136, %v1128
    %v1473 = vpack.c.b16 %v1137, %v1129
    %v1474 = vpack.c.b16 %v1146, %v1138
    %v1475 = vpack.c.b16 %v1147, %v1139
    %v1476 = vpack.c.b16 %v1148, %v1140
    %v1477 = vpack.c.b16 %v1149, %v1141
    %v1478 = vpack.c.b16 %v1150, %v1142
    %v1479 = vpack.c.b16 %v1151, %v1143
    %v1480 = vpack.c.b16 %v1152, %v1144
    %v1481 = vpack.c.b16 %v1153, %v1145
    %v1482 = vpack.c.b16 %v1162, %v1154
    %v1483 = vpack.c.b16 %v1163, %v1155
    %v1484 = vpack.c.b16 %v1164, %v1156
    %v1485 = vpack.c.b16 %v1165, %v1157
    %v1486 = vpack.c.b16 %v1166, %v1158
    %v1487 = vpack.c.b16 %v1167, %v1159
    %v1488 = vpack.c.b16 %v1168, %v1160
    %v1489 = vpack.c.b16 %v1169, %v1161
    %v1490 = vpack.c.b16 %v1178, %v1170
    %v1491 = vpack.c.b16 %v1179, %v1171
    %v1492 = vpack.c.b16 %v1180, %v1172
    %v1493 = vpack.c.b16 %v1181, %v1173
    %v1494 = vpack.c.b16 %v1182, %v1174
    %v1495 = vpack.c.b16 %v1183, %v1175
    %v1496 = vpack.c.b16 %v1184, %v1176
    %v1497 = vpack.c.b16 %v1185, %v1177
    %v1498 = vpack.c.b16 %v1194, %v1186
    %v1499 = vpack.c.b16 %v1195, %v1187
    %v1500 = vpack.c.b16 %v1196, %v1188
    %v1501 = vpack.c.b16 %v1197, %v1189
    %v1502 = vpack.c.b16 %v1198, %v1190
    %v1503 = vpack.c.b16 %v1199, %v1191
    %v1504 = vpack.c.b16 %v1200, %v1192
    %v1505 = vpack.c.b16 %v1201, %v1193
    %v1506 = vpack.c.b16 %v1210, %v1202
    %v1507 = vpack.c.b16 %v1211, %v1203
    %v1508 = vpack.c.b16 %v1212, %v1204
    %v1509 = vpack.c.b16 %v1213, %v1205
    %v1510 = vpack.c.b16 %v1214, %v1206
    %v1511 = vpack.c.b16 %v1215, %v1207
    %v1512 = vpack.c.b16 %v1216, %v1208
    %v1513 = vpack.c.b16 %v1217, %v1209
    %v1514 = vpack.c.b16 %v1226, %v1218
    %v1515 = vpack.c.b16 %v1227, %v1219
    %v1516 = vpack.c.b16 %v1228, %v1220
    %v1517 = vpack.c.b16 %v1229, %v1221
    %v1518 = vpack.c.b16 %v1230, %v1222
    %v1519 = vpack.c.b16 %v1231, %v1223
    %v1520 = vpack.c.b16 %v1232, %v1224
    %v1521 = vpack.c.b16 %v1233, %v1225
    %v1522 = vpack.c.b16 %v1242, %v1234
    %v1523 = vpack.c.b16 %v1243, %v1235
    %v1524 = vpack.c.b16 %v1244, %v1236
    %v1525 = vpack.c.b16 %v1245, %v1237
    %v1526 = vpack.c.b16 %v1246, %v1238
    %v1527 = vpack.c.b16 %v1247, %v1239
    %v1528 = vpack.c.b16 %v1248, %v1240
    %v1529 = vpack.c.b16 %v1249, %v1241
    %v1530 = vpack.c.b16 %v1258, %v1250
    %v1531 = vpack.c.b16 %v1259, %v1251
    %v1532 = vpack.c.b16 %v1260, %v1252
    %v1533 = vpack.c.b16 %v1261, %v1253
    %v1534 = vpack.c.b16 %v1262, %v1254
    %v1535 = vpack.c.b16 %v1263, %v1255
    %v1536 = vpack.c.b16 %v1264, %v1256
    %v1537 = vpack.c.b16 %v1265, %v1257
    %v1538 = vpack.c.b16 %v1274, %v1266
    %v1539 = vpack.c.b16 %v1275, %v1267
    %v1540 = vpack.c.b16 %v1276, %v1268
    %v1541 = vpack.c.b16 %v1277, %v1269
    %v1542 = vpack.c.b16 %v1278, %v1270
    %v1543 = vpack.c.b16 %v1279, %v1271
    %v1544 = vpack.c.b16 %v1280, %v1272
    %v1545 = vpack.c.b16 %v1281, %v1273
    %v1546 = vpack.c.b16 %v1290, %v1282
    %v1547 = vpack.c.b16 %v1291, %v1283
    %v1548 = vpack.c.b16 %v1292, %v1284
    %v1549 = vpack.c.b16 %v1293, %v1285
    %v1550 = vpack.c.b16 %v1294, %v1286
    %v1551 = vpack.c.b16 %v1295, %v1287
    %v1552 = vpack.c.b16 %v1296, %v1288
    %v1553 = vpack.c.b16 %v1297, %v1289
    %1810 = vmatpush.bf16.msra.mxu0 %v1354
    %1811 = vmatpush.bf16.msra.mxu0 %v1346
    %1812 = vmatpush.bf16.msra.mxu0 %v1338
    %1813 = vmatpush.bf16.msra.mxu0 %v1330
    %1814 = vmatpush.bf16.msra.mxu0 %v1322
    %1815 = vmatpush.bf16.msra.mxu0 %v1314
    %1816 = vmatpush.bf16.msra.mxu0 %v1306
    %1817 = vmatpush.bf16.msra.mxu0 %v1298
    %1818 = vmatmul.bf16.gmra.mxu0 %v252
    %v1819 = vpop.f32.mrf.mxu0
    %v1820 = vadd.f32 %v514, %v1819
    %v1821 = vpop.f32.mrf.mxu0
    %1822 = vdwg.mxu0
    %1823 = vmatpush.bf16.msra.mxu0 %v1418
    %1824 = vmatpush.bf16.msra.mxu0 %v1410
    %1825 = vmatpush.bf16.msra.mxu0 %v1402
    %1826 = vmatpush.bf16.msra.mxu0 %v1394
    %1827 = vmatpush.bf16.msra.mxu0 %v1386
    %1828 = vmatpush.bf16.msra.mxu0 %v1378
    %1829 = vmatpush.bf16.msra.mxu0 %v1370
    %1830 = vmatpush.bf16.msra.mxu0 %v1362
    %1831 = vmatmul.bf16.gmra.mxu0 %v253
    %v1832 = vpop.f32.mrf.mxu0
    %v1833 = vadd.f32 %v1820, %v1832
    %v1834 = vpop.f32.mrf.mxu0
    %1835 = vdwg.mxu0
    %1836 = vmatpush.bf16.msra.mxu0 %v1482
    %1837 = vmatpush.bf16.msra.mxu0 %v1474
    %1838 = vmatpush.bf16.msra.mxu0 %v1466
    %1839 = vmatpush.bf16.msra.mxu0 %v1458
    %1840 = vmatpush.bf16.msra.mxu0 %v1450
    %1841 = vmatpush.bf16.msra.mxu0 %v1442
    %1842 = vmatpush.bf16.msra.mxu0 %v1434
    %1843 = vmatpush.bf16.msra.mxu0 %v1426
    %1844 = vmatmul.bf16.gmra.mxu0 %v254
    %v1845 = vpop.f32.mrf.mxu0
    %v1846 = vadd.f32 %v1833, %v1845
    %v1847 = vpop.f32.mrf.mxu0
    %1848 = vdwg.mxu0
    %1849 = vmatpush.bf16.msra.mxu0 %v1546
    %1850 = vmatpush.bf16.msra.mxu0 %v1538
    %1851 = vmatpush.bf16.msra.mxu0 %v1530
    %1852 = vmatpush.bf16.msra.mxu0 %v1522
    %1853 = vmatpush.bf16.msra.mxu0 %v1514
    %1854 = vmatpush.bf16.msra.mxu0 %v1506
    %1855 = vmatpush.bf16.msra.mxu0 %v1498
    %1856 = vmatpush.bf16.msra.mxu0 %v1490
    %1857 = vmatmul.bf16.gmra.mxu0 %v255
    %v1858 = vpop.f32.mrf.mxu0
    %v1859 = vadd.f32 %v1846, %v1858
    %v1860 = vpop.f32.mrf.mxu0
    %1861 = vdwg.mxu0
    %1862 = vmatpush.bf16.msra.mxu0 %v1355
    %1863 = vmatpush.bf16.msra.mxu0 %v1347
    %1864 = vmatpush.bf16.msra.mxu0 %v1339
    %1865 = vmatpush.bf16.msra.mxu0 %v1331
    %1866 = vmatpush.bf16.msra.mxu0 %v1323
    %1867 = vmatpush.bf16.msra.mxu0 %v1315
    %1868 = vmatpush.bf16.msra.mxu0 %v1307
    %1869 = vmatpush.bf16.msra.mxu0 %v1299
    %1870 = vmatmul.bf16.gmra.mxu0 %v252
    %v1871 = vpop.f32.mrf.mxu0
    %v1872 = vadd.f32 %v515, %v1871
    %v1873 = vpop.f32.mrf.mxu0
    %1874 = vdwg.mxu0
    %1875 = vmatpush.bf16.msra.mxu0 %v1419
    %1876 = vmatpush.bf16.msra.mxu0 %v1411
    %1877 = vmatpush.bf16.msra.mxu0 %v1403
    %1878 = vmatpush.bf16.msra.mxu0 %v1395
    %1879 = vmatpush.bf16.msra.mxu0 %v1387
    %1880 = vmatpush.bf16.msra.mxu0 %v1379
    %1881 = vmatpush.bf16.msra.mxu0 %v1371
    %1882 = vmatpush.bf16.msra.mxu0 %v1363
    %1883 = vmatmul.bf16.gmra.mxu0 %v253
    %v1884 = vpop.f32.mrf.mxu0
    %v1885 = vadd.f32 %v1872, %v1884
    %v1886 = vpop.f32.mrf.mxu0
    %1887 = vdwg.mxu0
    %1888 = vmatpush.bf16.msra.mxu0 %v1483
    %1889 = vmatpush.bf16.msra.mxu0 %v1475
    %1890 = vmatpush.bf16.msra.mxu0 %v1467
    %1891 = vmatpush.bf16.msra.mxu0 %v1459
    %1892 = vmatpush.bf16.msra.mxu0 %v1451
    %1893 = vmatpush.bf16.msra.mxu0 %v1443
    %1894 = vmatpush.bf16.msra.mxu0 %v1435
    %1895 = vmatpush.bf16.msra.mxu0 %v1427
    %1896 = vmatmul.bf16.gmra.mxu0 %v254
    %v1897 = vpop.f32.mrf.mxu0
    %v1898 = vadd.f32 %v1885, %v1897
    %v1899 = vpop.f32.mrf.mxu0
    %1900 = vdwg.mxu0
    %1901 = vmatpush.bf16.msra.mxu0 %v1547
    %1902 = vmatpush.bf16.msra.mxu0 %v1539
    %1903 = vmatpush.bf16.msra.mxu0 %v1531
    %1904 = vmatpush.bf16.msra.mxu0 %v1523
    %1905 = vmatpush.bf16.msra.mxu0 %v1515
    %1906 = vmatpush.bf16.msra.mxu0 %v1507
    %1907 = vmatpush.bf16.msra.mxu0 %v1499
    %1908 = vmatpush.bf16.msra.mxu0 %v1491
    %1909 = vmatmul.bf16.gmra.mxu0 %v255
    %v1910 = vpop.f32.mrf.mxu0
    %v1911 = vadd.f32 %v1898, %v1910
    %v1912 = vpop.f32.mrf.mxu0
    %1913 = vdwg.mxu0
    %1914 = vmatpush.bf16.msra.mxu0 %v1356
    %1915 = vmatpush.bf16.msra.mxu0 %v1348
    %1916 = vmatpush.bf16.msra.mxu0 %v1340
    %1917 = vmatpush.bf16.msra.mxu0 %v1332
    %1918 = vmatpush.bf16.msra.mxu0 %v1324
    %1919 = vmatpush.bf16.msra.mxu0 %v1316
    %1920 = vmatpush.bf16.msra.mxu0 %v1308
    %1921 = vmatpush.bf16.msra.mxu0 %v1300
    %1922 = vmatmul.bf16.gmra.mxu0 %v252
    %v1923 = vpop.f32.mrf.mxu0
    %v1924 = vadd.f32 %v516, %v1923
    %v1925 = vpop.f32.mrf.mxu0
    %1926 = vdwg.mxu0
    %1927 = vmatpush.bf16.msra.mxu0 %v1420
    %1928 = vmatpush.bf16.msra.mxu0 %v1412
    %1929 = vmatpush.bf16.msra.mxu0 %v1404
    %1930 = vmatpush.bf16.msra.mxu0 %v1396
    %1931 = vmatpush.bf16.msra.mxu0 %v1388
    %1932 = vmatpush.bf16.msra.mxu0 %v1380
    %1933 = vmatpush.bf16.msra.mxu0 %v1372
    %1934 = vmatpush.bf16.msra.mxu0 %v1364
    %1935 = vmatmul.bf16.gmra.mxu0 %v253
    %v1936 = vpop.f32.mrf.mxu0
    %v1937 = vadd.f32 %v1924, %v1936
    %v1938 = vpop.f32.mrf.mxu0
    %1939 = vdwg.mxu0
    %1940 = vmatpush.bf16.msra.mxu0 %v1484
    %1941 = vmatpush.bf16.msra.mxu0 %v1476
    %1942 = vmatpush.bf16.msra.mxu0 %v1468
    %1943 = vmatpush.bf16.msra.mxu0 %v1460
    %1944 = vmatpush.bf16.msra.mxu0 %v1452
    %1945 = vmatpush.bf16.msra.mxu0 %v1444
    %1946 = vmatpush.bf16.msra.mxu0 %v1436
    %1947 = vmatpush.bf16.msra.mxu0 %v1428
    %1948 = vmatmul.bf16.gmra.mxu0 %v254
    %v1949 = vpop.f32.mrf.mxu0
    %v1950 = vadd.f32 %v1937, %v1949
    %v1951 = vpop.f32.mrf.mxu0
    %1952 = vdwg.mxu0
    %1953 = vmatpush.bf16.msra.mxu0 %v1548
    %1954 = vmatpush.bf16.msra.mxu0 %v1540
    %1955 = vmatpush.bf16.msra.mxu0 %v1532
    %1956 = vmatpush.bf16.msra.mxu0 %v1524
    %1957 = vmatpush.bf16.msra.mxu0 %v1516
    %1958 = vmatpush.bf16.msra.mxu0 %v1508
    %1959 = vmatpush.bf16.msra.mxu0 %v1500
    %1960 = vmatpush.bf16.msra.mxu0 %v1492
    %1961 = vmatmul.bf16.gmra.mxu0 %v255
    %v1962 = vpop.f32.mrf.mxu0
    %v1963 = vadd.f32 %v1950, %v1962
    %v1964 = vpop.f32.mrf.mxu0
    %1965 = vdwg.mxu0
    %1966 = vmatpush.bf16.msra.mxu0 %v1357
    %1967 = vmatpush.bf16.msra.mxu0 %v1349
    %1968 = vmatpush.bf16.msra.mxu0 %v1341
    %1969 = vmatpush.bf16.msra.mxu0 %v1333
    %1970 = vmatpush.bf16.msra.mxu0 %v1325
    %1971 = vmatpush.bf16.msra.mxu0 %v1317
    %1972 = vmatpush.bf16.msra.mxu0 %v1309
    %1973 = vmatpush.bf16.msra.mxu0 %v1301
    %1974 = vmatmul.bf16.gmra.mxu0 %v252
    %v1975 = vpop.f32.mrf.mxu0
    %v1976 = vadd.f32 %v517, %v1975
    %v1977 = vpop.f32.mrf.mxu0
    %1978 = vdwg.mxu0
    %1979 = vmatpush.bf16.msra.mxu0 %v1421
    %1980 = vmatpush.bf16.msra.mxu0 %v1413
    %1981 = vmatpush.bf16.msra.mxu0 %v1405
    %1982 = vmatpush.bf16.msra.mxu0 %v1397
    %1983 = vmatpush.bf16.msra.mxu0 %v1389
    %1984 = vmatpush.bf16.msra.mxu0 %v1381
    %1985 = vmatpush.bf16.msra.mxu0 %v1373
    %1986 = vmatpush.bf16.msra.mxu0 %v1365
    %1987 = vmatmul.bf16.gmra.mxu0 %v253
    %v1988 = vpop.f32.mrf.mxu0
    %v1989 = vadd.f32 %v1976, %v1988
    %v1990 = vpop.f32.mrf.mxu0
    %1991 = vdwg.mxu0
    %1992 = vmatpush.bf16.msra.mxu0 %v1485
    %1993 = vmatpush.bf16.msra.mxu0 %v1477
    %1994 = vmatpush.bf16.msra.mxu0 %v1469
    %1995 = vmatpush.bf16.msra.mxu0 %v1461
    %1996 = vmatpush.bf16.msra.mxu0 %v1453
    %1997 = vmatpush.bf16.msra.mxu0 %v1445
    %1998 = vmatpush.bf16.msra.mxu0 %v1437
    %1999 = vmatpush.bf16.msra.mxu0 %v1429
    %2000 = vmatmul.bf16.gmra.mxu0 %v254
    %v2001 = vpop.f32.mrf.mxu0
    %v2002 = vadd.f32 %v1989, %v2001
    %v2003 = vpop.f32.mrf.mxu0
    %2004 = vdwg.mxu0
    %2005 = vmatpush.bf16.msra.mxu0 %v1549
    %2006 = vmatpush.bf16.msra.mxu0 %v1541
    %2007 = vmatpush.bf16.msra.mxu0 %v1533
    %2008 = vmatpush.bf16.msra.mxu0 %v1525
    %2009 = vmatpush.bf16.msra.mxu0 %v1517
    %2010 = vmatpush.bf16.msra.mxu0 %v1509
    %2011 = vmatpush.bf16.msra.mxu0 %v1501
    %2012 = vmatpush.bf16.msra.mxu0 %v1493
    %2013 = vmatmul.bf16.gmra.mxu0 %v255
    %v2014 = vpop.f32.mrf.mxu0
    %v2015 = vadd.f32 %v2002, %v2014
    %v2016 = vpop.f32.mrf.mxu0
    %2017 = vdwg.mxu0
    %2018 = vmatpush.bf16.msra.mxu0 %v1358
    %2019 = vmatpush.bf16.msra.mxu0 %v1350
    %2020 = vmatpush.bf16.msra.mxu0 %v1342
    %2021 = vmatpush.bf16.msra.mxu0 %v1334
    %2022 = vmatpush.bf16.msra.mxu0 %v1326
    %2023 = vmatpush.bf16.msra.mxu0 %v1318
    %2024 = vmatpush.bf16.msra.mxu0 %v1310
    %2025 = vmatpush.bf16.msra.mxu0 %v1302
    %2026 = vmatmul.bf16.gmra.mxu0 %v252
    %v2027 = vpop.f32.mrf.mxu0
    %v2028 = vadd.f32 %v518, %v2027
    %v2029 = vpop.f32.mrf.mxu0
    %2030 = vdwg.mxu0
    %2031 = vmatpush.bf16.msra.mxu0 %v1422
    %2032 = vmatpush.bf16.msra.mxu0 %v1414
    %2033 = vmatpush.bf16.msra.mxu0 %v1406
    %2034 = vmatpush.bf16.msra.mxu0 %v1398
    %2035 = vmatpush.bf16.msra.mxu0 %v1390
    %2036 = vmatpush.bf16.msra.mxu0 %v1382
    %2037 = vmatpush.bf16.msra.mxu0 %v1374
    %2038 = vmatpush.bf16.msra.mxu0 %v1366
    %2039 = vmatmul.bf16.gmra.mxu0 %v253
    %v2040 = vpop.f32.mrf.mxu0
    %v2041 = vadd.f32 %v2028, %v2040
    %v2042 = vpop.f32.mrf.mxu0
    %2043 = vdwg.mxu0
    %2044 = vmatpush.bf16.msra.mxu0 %v1486
    %2045 = vmatpush.bf16.msra.mxu0 %v1478
    %2046 = vmatpush.bf16.msra.mxu0 %v1470
    %2047 = vmatpush.bf16.msra.mxu0 %v1462
    %2048 = vmatpush.bf16.msra.mxu0 %v1454
    %2049 = vmatpush.bf16.msra.mxu0 %v1446
    %2050 = vmatpush.bf16.msra.mxu0 %v1438
    %2051 = vmatpush.bf16.msra.mxu0 %v1430
    %2052 = vmatmul.bf16.gmra.mxu0 %v254
    %v2053 = vpop.f32.mrf.mxu0
    %v2054 = vadd.f32 %v2041, %v2053
    %v2055 = vpop.f32.mrf.mxu0
    %2056 = vdwg.mxu0
    %2057 = vmatpush.bf16.msra.mxu0 %v1550
    %2058 = vmatpush.bf16.msra.mxu0 %v1542
    %2059 = vmatpush.bf16.msra.mxu0 %v1534
    %2060 = vmatpush.bf16.msra.mxu0 %v1526
    %2061 = vmatpush.bf16.msra.mxu0 %v1518
    %2062 = vmatpush.bf16.msra.mxu0 %v1510
    %2063 = vmatpush.bf16.msra.mxu0 %v1502
    %2064 = vmatpush.bf16.msra.mxu0 %v1494
    %2065 = vmatmul.bf16.gmra.mxu0 %v255
    %v2066 = vpop.f32.mrf.mxu0
    %v2067 = vadd.f32 %v2054, %v2066
    %v2068 = vpop.f32.mrf.mxu0
    %2069 = vdwg.mxu0
    %2070 = vmatpush.bf16.msra.mxu0 %v1359
    %2071 = vmatpush.bf16.msra.mxu0 %v1351
    %2072 = vmatpush.bf16.msra.mxu0 %v1343
    %2073 = vmatpush.bf16.msra.mxu0 %v1335
    %2074 = vmatpush.bf16.msra.mxu0 %v1327
    %2075 = vmatpush.bf16.msra.mxu0 %v1319
    %2076 = vmatpush.bf16.msra.mxu0 %v1311
    %2077 = vmatpush.bf16.msra.mxu0 %v1303
    %2078 = vmatmul.bf16.gmra.mxu0 %v252
    %v2079 = vpop.f32.mrf.mxu0
    %v2080 = vadd.f32 %v519, %v2079
    %v2081 = vpop.f32.mrf.mxu0
    %2082 = vdwg.mxu0
    %2083 = vmatpush.bf16.msra.mxu0 %v1423
    %2084 = vmatpush.bf16.msra.mxu0 %v1415
    %2085 = vmatpush.bf16.msra.mxu0 %v1407
    %2086 = vmatpush.bf16.msra.mxu0 %v1399
    %2087 = vmatpush.bf16.msra.mxu0 %v1391
    %2088 = vmatpush.bf16.msra.mxu0 %v1383
    %2089 = vmatpush.bf16.msra.mxu0 %v1375
    %2090 = vmatpush.bf16.msra.mxu0 %v1367
    %2091 = vmatmul.bf16.gmra.mxu0 %v253
    %v2092 = vpop.f32.mrf.mxu0
    %v2093 = vadd.f32 %v2080, %v2092
    %v2094 = vpop.f32.mrf.mxu0
    %2095 = vdwg.mxu0
    %2096 = vmatpush.bf16.msra.mxu0 %v1487
    %2097 = vmatpush.bf16.msra.mxu0 %v1479
    %2098 = vmatpush.bf16.msra.mxu0 %v1471
    %2099 = vmatpush.bf16.msra.mxu0 %v1463
    %2100 = vmatpush.bf16.msra.mxu0 %v1455
    %2101 = vmatpush.bf16.msra.mxu0 %v1447
    %2102 = vmatpush.bf16.msra.mxu0 %v1439
    %2103 = vmatpush.bf16.msra.mxu0 %v1431
    %2104 = vmatmul.bf16.gmra.mxu0 %v254
    %v2105 = vpop.f32.mrf.mxu0
    %v2106 = vadd.f32 %v2093, %v2105
    %v2107 = vpop.f32.mrf.mxu0
    %2108 = vdwg.mxu0
    %2109 = vmatpush.bf16.msra.mxu0 %v1551
    %2110 = vmatpush.bf16.msra.mxu0 %v1543
    %2111 = vmatpush.bf16.msra.mxu0 %v1535
    %2112 = vmatpush.bf16.msra.mxu0 %v1527
    %2113 = vmatpush.bf16.msra.mxu0 %v1519
    %2114 = vmatpush.bf16.msra.mxu0 %v1511
    %2115 = vmatpush.bf16.msra.mxu0 %v1503
    %2116 = vmatpush.bf16.msra.mxu0 %v1495
    %2117 = vmatmul.bf16.gmra.mxu0 %v255
    %v2118 = vpop.f32.mrf.mxu0
    %v2119 = vadd.f32 %v2106, %v2118
    %v2120 = vpop.f32.mrf.mxu0
    %2121 = vdwg.mxu0
    %2122 = vmatpush.bf16.msra.mxu0 %v1360
    %2123 = vmatpush.bf16.msra.mxu0 %v1352
    %2124 = vmatpush.bf16.msra.mxu0 %v1344
    %2125 = vmatpush.bf16.msra.mxu0 %v1336
    %2126 = vmatpush.bf16.msra.mxu0 %v1328
    %2127 = vmatpush.bf16.msra.mxu0 %v1320
    %2128 = vmatpush.bf16.msra.mxu0 %v1312
    %2129 = vmatpush.bf16.msra.mxu0 %v1304
    %2130 = vmatmul.bf16.gmra.mxu0 %v252
    %v2131 = vpop.f32.mrf.mxu0
    %v2132 = vadd.f32 %v520, %v2131
    %v2133 = vpop.f32.mrf.mxu0
    %2134 = vdwg.mxu0
    %2135 = vmatpush.bf16.msra.mxu0 %v1424
    %2136 = vmatpush.bf16.msra.mxu0 %v1416
    %2137 = vmatpush.bf16.msra.mxu0 %v1408
    %2138 = vmatpush.bf16.msra.mxu0 %v1400
    %2139 = vmatpush.bf16.msra.mxu0 %v1392
    %2140 = vmatpush.bf16.msra.mxu0 %v1384
    %2141 = vmatpush.bf16.msra.mxu0 %v1376
    %2142 = vmatpush.bf16.msra.mxu0 %v1368
    %2143 = vmatmul.bf16.gmra.mxu0 %v253
    %v2144 = vpop.f32.mrf.mxu0
    %v2145 = vadd.f32 %v2132, %v2144
    %v2146 = vpop.f32.mrf.mxu0
    %2147 = vdwg.mxu0
    %2148 = vmatpush.bf16.msra.mxu0 %v1488
    %2149 = vmatpush.bf16.msra.mxu0 %v1480
    %2150 = vmatpush.bf16.msra.mxu0 %v1472
    %2151 = vmatpush.bf16.msra.mxu0 %v1464
    %2152 = vmatpush.bf16.msra.mxu0 %v1456
    %2153 = vmatpush.bf16.msra.mxu0 %v1448
    %2154 = vmatpush.bf16.msra.mxu0 %v1440
    %2155 = vmatpush.bf16.msra.mxu0 %v1432
    %2156 = vmatmul.bf16.gmra.mxu0 %v254
    %v2157 = vpop.f32.mrf.mxu0
    %v2158 = vadd.f32 %v2145, %v2157
    %v2159 = vpop.f32.mrf.mxu0
    %2160 = vdwg.mxu0
    %2161 = vmatpush.bf16.msra.mxu0 %v1552
    %2162 = vmatpush.bf16.msra.mxu0 %v1544
    %2163 = vmatpush.bf16.msra.mxu0 %v1536
    %2164 = vmatpush.bf16.msra.mxu0 %v1528
    %2165 = vmatpush.bf16.msra.mxu0 %v1520
    %2166 = vmatpush.bf16.msra.mxu0 %v1512
    %2167 = vmatpush.bf16.msra.mxu0 %v1504
    %2168 = vmatpush.bf16.msra.mxu0 %v1496
    %2169 = vmatmul.bf16.gmra.mxu0 %v255
    %v2170 = vpop.f32.mrf.mxu0
    %v2171 = vadd.f32 %v2158, %v2170
    %v2172 = vpop.f32.mrf.mxu0
    %2173 = vdwg.mxu0
    %2174 = vmatpush.bf16.msra.mxu0 %v1361
    %2175 = vmatpush.bf16.msra.mxu0 %v1353
    %2176 = vmatpush.bf16.msra.mxu0 %v1345
    %2177 = vmatpush.bf16.msra.mxu0 %v1337
    %2178 = vmatpush.bf16.msra.mxu0 %v1329
    %2179 = vmatpush.bf16.msra.mxu0 %v1321
    %2180 = vmatpush.bf16.msra.mxu0 %v1313
    %2181 = vmatpush.bf16.msra.mxu0 %v1305
    %2182 = vmatmul.bf16.gmra.mxu0 %v252
    %v2183 = vpop.f32.mrf.mxu0
    %v2184 = vadd.f32 %v521, %v2183
    %v2185 = vpop.f32.mrf.mxu0
    %2186 = vdwg.mxu0
    %2187 = vmatpush.bf16.msra.mxu0 %v1425
    %2188 = vmatpush.bf16.msra.mxu0 %v1417
    %2189 = vmatpush.bf16.msra.mxu0 %v1409
    %2190 = vmatpush.bf16.msra.mxu0 %v1401
    %2191 = vmatpush.bf16.msra.mxu0 %v1393
    %2192 = vmatpush.bf16.msra.mxu0 %v1385
    %2193 = vmatpush.bf16.msra.mxu0 %v1377
    %2194 = vmatpush.bf16.msra.mxu0 %v1369
    %2195 = vmatmul.bf16.gmra.mxu0 %v253
    %v2196 = vpop.f32.mrf.mxu0
    %v2197 = vadd.f32 %v2184, %v2196
    %v2198 = vpop.f32.mrf.mxu0
    %2199 = vdwg.mxu0
    %2200 = vmatpush.bf16.msra.mxu0 %v1489
    %2201 = vmatpush.bf16.msra.mxu0 %v1481
    %2202 = vmatpush.bf16.msra.mxu0 %v1473
    %2203 = vmatpush.bf16.msra.mxu0 %v1465
    %2204 = vmatpush.bf16.msra.mxu0 %v1457
    %2205 = vmatpush.bf16.msra.mxu0 %v1449
    %2206 = vmatpush.bf16.msra.mxu0 %v1441
    %2207 = vmatpush.bf16.msra.mxu0 %v1433
    %2208 = vmatmul.bf16.gmra.mxu0 %v254
    %v2209 = vpop.f32.mrf.mxu0
    %v2210 = vadd.f32 %v2197, %v2209
    %v2211 = vpop.f32.mrf.mxu0
    %2212 = vdwg.mxu0
    %2213 = vmatpush.bf16.msra.mxu0 %v1553
    %2214 = vmatpush.bf16.msra.mxu0 %v1545
    %2215 = vmatpush.bf16.msra.mxu0 %v1537
    %2216 = vmatpush.bf16.msra.mxu0 %v1529
    %2217 = vmatpush.bf16.msra.mxu0 %v1521
    %2218 = vmatpush.bf16.msra.mxu0 %v1513
    %2219 = vmatpush.bf16.msra.mxu0 %v1505
    %2220 = vmatpush.bf16.msra.mxu0 %v1497
    %2221 = vmatmul.bf16.gmra.mxu0 %v255
    %v2222 = vpop.f32.mrf.mxu0
    %v2223 = vadd.f32 %v2210, %v2222
    %v2224 = vpop.f32.mrf.mxu0
    %2225 = vdwg.mxu0
    %v2226 = vmax.f32 %v1859, 0.0
    %v2227 = vmax.f32 %v1911, 0.0
    %v2228 = vmax.f32 %v1963, 0.0
    %v2229 = vmax.f32 %v2015, 0.0
    %v2230 = vmax.f32 %v2067, 0.0
    %v2231 = vmax.f32 %v2119, 0.0
    %v2232 = vmax.f32 %v2171, 0.0
    %v2233 = vmax.f32 %v2223, 0.0
    %v2234 = vpack.c.bf16 %v2226, %v2226
    %v2235 = vpack.c.bf16 %v2227, %v2227
    %v2236 = vpack.c.bf16 %v2228, %v2228
    %v2237 = vpack.c.bf16 %v2229, %v2229
    %v2238 = vpack.c.bf16 %v2230, %v2230
    %v2239 = vpack.c.bf16 %v2231, %v2231
    %v2240 = vpack.c.bf16 %v2232, %v2232
    %v2241 = vpack.c.bf16 %v2233, %v2233
    %v2242 = vld [vmem:[#allocation6] sm:$0xff]
    %v2243 = vld [vmem:[#allocation6 + $0x8] sm:$0xff]
    %v2244 = vld [vmem:[#allocation6 + $0x10] sm:$0xff]
    %v2245 = vld [vmem:[#allocation6 + $0x18] sm:$0xff]
    %v2246 = vld [vmem:[#allocation6 + $0x20] sm:$0xff]
    %v2247 = vld [vmem:[#allocation6 + $0x28] sm:$0xff]
    %v2248 = vld [vmem:[#allocation6 + $0x30] sm:$0xff]
    %v2249 = vld [vmem:[#allocation6 + $0x38] sm:$0xff]
    %v2250 = vld [vmem:[#allocation6 + $0x40] sm:$0xff]
    %v2251 = vld [vmem:[#allocation6 + $0x48] sm:$0xff]
    %v2252 = vld [vmem:[#allocation6 + $0x50] sm:$0xff]
    %v2253 = vld [vmem:[#allocation6 + $0x58] sm:$0xff]
    %v2254 = vld [vmem:[#allocation6 + $0x60] sm:$0xff]
    %v2255 = vld [vmem:[#allocation6 + $0x68] sm:$0xff]
    %v2256 = vld [vmem:[#allocation6 + $0x70] sm:$0xff]
    %v2257 = vld [vmem:[#allocation6 + $0x78] sm:$0xff]
    %v2258 = vld [vmem:[#allocation6 + $0x80] sm:$0xff]
    %v2259 = vld [vmem:[#allocation6 + $0x88] sm:$0xff]
    %v2260 = vld [vmem:[#allocation6 + $0x90] sm:$0xff]
    %v2261 = vld [vmem:[#allocation6 + $0x98] sm:$0xff]
    %v2262 = vld [vmem:[#allocation6 + $0xa0] sm:$0xff]
    %v2263 = vld [vmem:[#allocation6 + $0xa8] sm:$0xff]
    %v2264 = vld [vmem:[#allocation6 + $0xb0] sm:$0xff]
    %v2265 = vld [vmem:[#allocation6 + $0xb8] sm:$0xff]
    %v2266 = vld [vmem:[#allocation6 + $0xc0] sm:$0xff]
    %v2267 = vld [vmem:[#allocation6 + $0xc8] sm:$0xff]
    %v2268 = vld [vmem:[#allocation6 + $0xd0] sm:$0xff]
    %v2269 = vld [vmem:[#allocation6 + $0xd8] sm:$0xff]
    %v2270 = vld [vmem:[#allocation6 + $0xe0] sm:$0xff]
    %v2271 = vld [vmem:[#allocation6 + $0xe8] sm:$0xff]
    %v2272 = vld [vmem:[#allocation6 + $0xf0] sm:$0xff]
    %v2273 = vld [vmem:[#allocation6 + $0xf8] sm:$0xff]
    %v2274 = vld [vmem:[#allocation6 + $0x100] sm:$0xff]
    %v2275 = vld [vmem:[#allocation6 + $0x108] sm:$0xff]
    %v2276 = vld [vmem:[#allocation6 + $0x110] sm:$0xff]
    %v2277 = vld [vmem:[#allocation6 + $0x118] sm:$0xff]
    %v2278 = vld [vmem:[#allocation6 + $0x120] sm:$0xff]
    %v2279 = vld [vmem:[#allocation6 + $0x128] sm:$0xff]
    %v2280 = vld [vmem:[#allocation6 + $0x130] sm:$0xff]
    %v2281 = vld [vmem:[#allocation6 + $0x138] sm:$0xff]
    %v2282 = vld [vmem:[#allocation6 + $0x140] sm:$0xff]
    %v2283 = vld [vmem:[#allocation6 + $0x148] sm:$0xff]
    %v2284 = vld [vmem:[#allocation6 + $0x150] sm:$0xff]
    %v2285 = vld [vmem:[#allocation6 + $0x158] sm:$0xff]
    %v2286 = vld [vmem:[#allocation6 + $0x160] sm:$0xff]
    %v2287 = vld [vmem:[#allocation6 + $0x168] sm:$0xff]
    %v2288 = vld [vmem:[#allocation6 + $0x170] sm:$0xff]
    %v2289 = vld [vmem:[#allocation6 + $0x178] sm:$0xff]
    %v2290 = vld [vmem:[#allocation6 + $0x180] sm:$0xff]
    %v2291 = vld [vmem:[#allocation6 + $0x188] sm:$0xff]
    %v2292 = vld [vmem:[#allocation6 + $0x190] sm:$0xff]
    %v2293 = vld [vmem:[#allocation6 + $0x198] sm:$0xff]
    %v2294 = vld [vmem:[#allocation6 + $0x1a0] sm:$0xff]
    %v2295 = vld [vmem:[#allocation6 + $0x1a8] sm:$0xff]
    %v2296 = vld [vmem:[#allocation6 + $0x1b0] sm:$0xff]
    %v2297 = vld [vmem:[#allocation6 + $0x1b8] sm:$0xff]
    %v2298 = vld [vmem:[#allocation6 + $0x1c0] sm:$0xff]
    %v2299 = vld [vmem:[#allocation6 + $0x1c8] sm:$0xff]
    %v2300 = vld [vmem:[#allocation6 + $0x1d0] sm:$0xff]
    %v2301 = vld [vmem:[#allocation6 + $0x1d8] sm:$0xff]
    %v2302 = vld [vmem:[#allocation6 + $0x1e0] sm:$0xff]
    %v2303 = vld [vmem:[#allocation6 + $0x1e8] sm:$0xff]
    %v2304 = vld [vmem:[#allocation6 + $0x1f0] sm:$0xff]
    %v2305 = vld [vmem:[#allocation6 + $0x1f8] sm:$0xff]
    %v2306 = vld [vmem:[#allocation6 + $0x200] sm:$0xff]
    %v2307 = vld [vmem:[#allocation6 + $0x208] sm:$0xff]
    %v2308 = vld [vmem:[#allocation6 + $0x210] sm:$0xff]
    %v2309 = vld [vmem:[#allocation6 + $0x218] sm:$0xff]
    %v2310 = vld [vmem:[#allocation6 + $0x220] sm:$0xff]
    %v2311 = vld [vmem:[#allocation6 + $0x228] sm:$0xff]
    %v2312 = vld [vmem:[#allocation6 + $0x230] sm:$0xff]
    %v2313 = vld [vmem:[#allocation6 + $0x238] sm:$0xff]
    %v2314 = vld [vmem:[#allocation6 + $0x240] sm:$0xff]
    %v2315 = vld [vmem:[#allocation6 + $0x248] sm:$0xff]
    %v2316 = vld [vmem:[#allocation6 + $0x250] sm:$0xff]
    %v2317 = vld [vmem:[#allocation6 + $0x258] sm:$0xff]
    %v2318 = vld [vmem:[#allocation6 + $0x260] sm:$0xff]
    %v2319 = vld [vmem:[#allocation6 + $0x268] sm:$0xff]
    %v2320 = vld [vmem:[#allocation6 + $0x270] sm:$0xff]
    %v2321 = vld [vmem:[#allocation6 + $0x278] sm:$0xff]
    %v2322 = vld [vmem:[#allocation6 + $0x280] sm:$0xff]
    %v2323 = vld [vmem:[#allocation6 + $0x288] sm:$0xff]
    %v2324 = vld [vmem:[#allocation6 + $0x290] sm:$0xff]
    %v2325 = vld [vmem:[#allocation6 + $0x298] sm:$0xff]
    %v2326 = vld [vmem:[#allocation6 + $0x2a0] sm:$0xff]
    %v2327 = vld [vmem:[#allocation6 + $0x2a8] sm:$0xff]
    %v2328 = vld [vmem:[#allocation6 + $0x2b0] sm:$0xff]
    %v2329 = vld [vmem:[#allocation6 + $0x2b8] sm:$0xff]
    %v2330 = vld [vmem:[#allocation6 + $0x2c0] sm:$0xff]
    %v2331 = vld [vmem:[#allocation6 + $0x2c8] sm:$0xff]
    %v2332 = vld [vmem:[#allocation6 + $0x2d0] sm:$0xff]
    %v2333 = vld [vmem:[#allocation6 + $0x2d8] sm:$0xff]
    %v2334 = vld [vmem:[#allocation6 + $0x2e0] sm:$0xff]
    %v2335 = vld [vmem:[#allocation6 + $0x2e8] sm:$0xff]
    %v2336 = vld [vmem:[#allocation6 + $0x2f0] sm:$0xff]
    %v2337 = vld [vmem:[#allocation6 + $0x2f8] sm:$0xff]
    %v2338 = vld [vmem:[#allocation6 + $0x300] sm:$0xff]
    %v2339 = vld [vmem:[#allocation6 + $0x308] sm:$0xff]
    %v2340 = vld [vmem:[#allocation6 + $0x310] sm:$0xff]
    %v2341 = vld [vmem:[#allocation6 + $0x318] sm:$0xff]
    %v2342 = vld [vmem:[#allocation6 + $0x320] sm:$0xff]
    %v2343 = vld [vmem:[#allocation6 + $0x328] sm:$0xff]
    %v2344 = vld [vmem:[#allocation6 + $0x330] sm:$0xff]
    %v2345 = vld [vmem:[#allocation6 + $0x338] sm:$0xff]
    %v2346 = vld [vmem:[#allocation6 + $0x340] sm:$0xff]
    %v2347 = vld [vmem:[#allocation6 + $0x348] sm:$0xff]
    %v2348 = vld [vmem:[#allocation6 + $0x350] sm:$0xff]
    %v2349 = vld [vmem:[#allocation6 + $0x358] sm:$0xff]
    %v2350 = vld [vmem:[#allocation6 + $0x360] sm:$0xff]
    %v2351 = vld [vmem:[#allocation6 + $0x368] sm:$0xff]
    %v2352 = vld [vmem:[#allocation6 + $0x370] sm:$0xff]
    %v2353 = vld [vmem:[#allocation6 + $0x378] sm:$0xff]
    %v2354 = vld [vmem:[#allocation6 + $0x380] sm:$0xff]
    %v2355 = vld [vmem:[#allocation6 + $0x388] sm:$0xff]
    %v2356 = vld [vmem:[#allocation6 + $0x390] sm:$0xff]
    %v2357 = vld [vmem:[#allocation6 + $0x398] sm:$0xff]
    %v2358 = vld [vmem:[#allocation6 + $0x3a0] sm:$0xff]
    %v2359 = vld [vmem:[#allocation6 + $0x3a8] sm:$0xff]
    %v2360 = vld [vmem:[#allocation6 + $0x3b0] sm:$0xff]
    %v2361 = vld [vmem:[#allocation6 + $0x3b8] sm:$0xff]
    %v2362 = vld [vmem:[#allocation6 + $0x3c0] sm:$0xff]
    %v2363 = vld [vmem:[#allocation6 + $0x3c8] sm:$0xff]
    %v2364 = vld [vmem:[#allocation6 + $0x3d0] sm:$0xff]
    %v2365 = vld [vmem:[#allocation6 + $0x3d8] sm:$0xff]
    %v2366 = vld [vmem:[#allocation6 + $0x3e0] sm:$0xff]
    %v2367 = vld [vmem:[#allocation6 + $0x3e8] sm:$0xff]
    %v2368 = vld [vmem:[#allocation6 + $0x3f0] sm:$0xff]
    %v2369 = vld [vmem:[#allocation6 + $0x3f8] sm:$0xff]
    %v2370 = vld [vmem:[#allocation7] sm:$0x3]
    %v2372 = vperm.slane %v2370, 0
    %v2373 = vperm.slane %v2370, 1
    %v2504 = vunpack.c.l.b16 %v2242
    %v2505 = vunpack.c.h.b16 %v2242
    %v2506 = vunpack.c.l.b16 %v2243
    %v2507 = vunpack.c.h.b16 %v2243
    %v2508 = vunpack.c.l.b16 %v2244
    %v2509 = vunpack.c.h.b16 %v2244
    %v2510 = vunpack.c.l.b16 %v2245
    %v2511 = vunpack.c.h.b16 %v2245
    %v2512 = vunpack.c.l.b16 %v2246
    %v2513 = vunpack.c.h.b16 %v2246
    %v2514 = vunpack.c.l.b16 %v2247
    %v2515 = vunpack.c.h.b16 %v2247
    %v2516 = vunpack.c.l.b16 %v2248
    %v2517 = vunpack.c.h.b16 %v2248
    %v2518 = vunpack.c.l.b16 %v2249
    %v2519 = vunpack.c.h.b16 %v2249
    %v2520 = vunpack.c.l.b16 %v2250
    %v2521 = vunpack.c.h.b16 %v2250
    %v2522 = vunpack.c.l.b16 %v2251
    %v2523 = vunpack.c.h.b16 %v2251
    %v2524 = vunpack.c.l.b16 %v2252
    %v2525 = vunpack.c.h.b16 %v2252
    %v2526 = vunpack.c.l.b16 %v2253
    %v2527 = vunpack.c.h.b16 %v2253
    %v2528 = vunpack.c.l.b16 %v2254
    %v2529 = vunpack.c.h.b16 %v2254
    %v2530 = vunpack.c.l.b16 %v2255
    %v2531 = vunpack.c.h.b16 %v2255
    %v2532 = vunpack.c.l.b16 %v2256
    %v2533 = vunpack.c.h.b16 %v2256
    %v2534 = vunpack.c.l.b16 %v2257
    %v2535 = vunpack.c.h.b16 %v2257
    %v2536 = vunpack.c.l.b16 %v2258
    %v2537 = vunpack.c.h.b16 %v2258
    %v2538 = vunpack.c.l.b16 %v2259
    %v2539 = vunpack.c.h.b16 %v2259
    %v2540 = vunpack.c.l.b16 %v2260
    %v2541 = vunpack.c.h.b16 %v2260
    %v2542 = vunpack.c.l.b16 %v2261
    %v2543 = vunpack.c.h.b16 %v2261
    %v2544 = vunpack.c.l.b16 %v2262
    %v2545 = vunpack.c.h.b16 %v2262
    %v2546 = vunpack.c.l.b16 %v2263
    %v2547 = vunpack.c.h.b16 %v2263
    %v2548 = vunpack.c.l.b16 %v2264
    %v2549 = vunpack.c.h.b16 %v2264
    %v2550 = vunpack.c.l.b16 %v2265
    %v2551 = vunpack.c.h.b16 %v2265
    %v2552 = vunpack.c.l.b16 %v2266
    %v2553 = vunpack.c.h.b16 %v2266
    %v2554 = vunpack.c.l.b16 %v2267
    %v2555 = vunpack.c.h.b16 %v2267
    %v2556 = vunpack.c.l.b16 %v2268
    %v2557 = vunpack.c.h.b16 %v2268
    %v2558 = vunpack.c.l.b16 %v2269
    %v2559 = vunpack.c.h.b16 %v2269
    %v2560 = vunpack.c.l.b16 %v2270
    %v2561 = vunpack.c.h.b16 %v2270
    %v2562 = vunpack.c.l.b16 %v2271
    %v2563 = vunpack.c.h.b16 %v2271
    %v2564 = vunpack.c.l.b16 %v2272
    %v2565 = vunpack.c.h.b16 %v2272
    %v2566 = vunpack.c.l.b16 %v2273
    %v2567 = vunpack.c.h.b16 %v2273
    %v2568 = vunpack.c.l.b16 %v2274
    %v2569 = vunpack.c.h.b16 %v2274
    %v2570 = vunpack.c.l.b16 %v2275
    %v2571 = vunpack.c.h.b16 %v2275
    %v2572 = vunpack.c.l.b16 %v2276
    %v2573 = vunpack.c.h.b16 %v2276
    %v2574 = vunpack.c.l.b16 %v2277
    %v2575 = vunpack.c.h.b16 %v2277
    %v2576 = vunpack.c.l.b16 %v2278
    %v2577 = vunpack.c.h.b16 %v2278
    %v2578 = vunpack.c.l.b16 %v2279
    %v2579 = vunpack.c.h.b16 %v2279
    %v2580 = vunpack.c.l.b16 %v2280
    %v2581 = vunpack.c.h.b16 %v2280
    %v2582 = vunpack.c.l.b16 %v2281
    %v2583 = vunpack.c.h.b16 %v2281
    %v2584 = vunpack.c.l.b16 %v2282
    %v2585 = vunpack.c.h.b16 %v2282
    %v2586 = vunpack.c.l.b16 %v2283
    %v2587 = vunpack.c.h.b16 %v2283
    %v2588 = vunpack.c.l.b16 %v2284
    %v2589 = vunpack.c.h.b16 %v2284
    %v2590 = vunpack.c.l.b16 %v2285
    %v2591 = vunpack.c.h.b16 %v2285
    %v2592 = vunpack.c.l.b16 %v2286
    %v2593 = vunpack.c.h.b16 %v2286
    %v2594 = vunpack.c.l.b16 %v2287
    %v2595 = vunpack.c.h.b16 %v2287
    %v2596 = vunpack.c.l.b16 %v2288
    %v2597 = vunpack.c.h.b16 %v2288
    %v2598 = vunpack.c.l.b16 %v2289
    %v2599 = vunpack.c.h.b16 %v2289
    %v2600 = vunpack.c.l.b16 %v2290
    %v2601 = vunpack.c.h.b16 %v2290
    %v2602 = vunpack.c.l.b16 %v2291
    %v2603 = vunpack.c.h.b16 %v2291
    %v2604 = vunpack.c.l.b16 %v2292
    %v2605 = vunpack.c.h.b16 %v2292
    %v2606 = vunpack.c.l.b16 %v2293
    %v2607 = vunpack.c.h.b16 %v2293
    %v2608 = vunpack.c.l.b16 %v2294
    %v2609 = vunpack.c.h.b16 %v2294
    %v2610 = vunpack.c.l.b16 %v2295
    %v2611 = vunpack.c.h.b16 %v2295
    %v2612 = vunpack.c.l.b16 %v2296
    %v2613 = vunpack.c.h.b16 %v2296
    %v2614 = vunpack.c.l.b16 %v2297
    %v2615 = vunpack.c.h.b16 %v2297
    %v2616 = vunpack.c.l.b16 %v2298
    %v2617 = vunpack.c.h.b16 %v2298
    %v2618 = vunpack.c.l.b16 %v2299
    %v2619 = vunpack.c.h.b16 %v2299
    %v2620 = vunpack.c.l.b16 %v2300
    %v2621 = vunpack.c.h.b16 %v2300
    %v2622 = vunpack.c.l.b16 %v2301
    %v2623 = vunpack.c.h.b16 %v2301
    %v2624 = vunpack.c.l.b16 %v2302
    %v2625 = vunpack.c.h.b16 %v2302
    %v2626 = vunpack.c.l.b16 %v2303
    %v2627 = vunpack.c.h.b16 %v2303
    %v2628 = vunpack.c.l.b16 %v2304
    %v2629 = vunpack.c.h.b16 %v2304
    %v2630 = vunpack.c.l.b16 %v2305
    %v2631 = vunpack.c.h.b16 %v2305
    %v2632 = vunpack.c.l.b16 %v2306
    %v2633 = vunpack.c.h.b16 %v2306
    %v2634 = vunpack.c.l.b16 %v2307
    %v2635 = vunpack.c.h.b16 %v2307
    %v2636 = vunpack.c.l.b16 %v2308
    %v2637 = vunpack.c.h.b16 %v2308
    %v2638 = vunpack.c.l.b16 %v2309
    %v2639 = vunpack.c.h.b16 %v2309
    %v2640 = vunpack.c.l.b16 %v2310
    %v2641 = vunpack.c.h.b16 %v2310
    %v2642 = vunpack.c.l.b16 %v2311
    %v2643 = vunpack.c.h.b16 %v2311
    %v2644 = vunpack.c.l.b16 %v2312
    %v2645 = vunpack.c.h.b16 %v2312
    %v2646 = vunpack.c.l.b16 %v2313
    %v2647 = vunpack.c.h.b16 %v2313
    %v2648 = vunpack.c.l.b16 %v2314
    %v2649 = vunpack.c.h.b16 %v2314
    %v2650 = vunpack.c.l.b16 %v2315
    %v2651 = vunpack.c.h.b16 %v2315
    %v2652 = vunpack.c.l.b16 %v2316
    %v2653 = vunpack.c.h.b16 %v2316
    %v2654 = vunpack.c.l.b16 %v2317
    %v2655 = vunpack.c.h.b16 %v2317
    %v2656 = vunpack.c.l.b16 %v2318
    %v2657 = vunpack.c.h.b16 %v2318
    %v2658 = vunpack.c.l.b16 %v2319
    %v2659 = vunpack.c.h.b16 %v2319
    %v2660 = vunpack.c.l.b16 %v2320
    %v2661 = vunpack.c.h.b16 %v2320
    %v2662 = vunpack.c.l.b16 %v2321
    %v2663 = vunpack.c.h.b16 %v2321
    %v2664 = vunpack.c.l.b16 %v2322
    %v2665 = vunpack.c.h.b16 %v2322
    %v2666 = vunpack.c.l.b16 %v2323
    %v2667 = vunpack.c.h.b16 %v2323
    %v2668 = vunpack.c.l.b16 %v2324
    %v2669 = vunpack.c.h.b16 %v2324
    %v2670 = vunpack.c.l.b16 %v2325
    %v2671 = vunpack.c.h.b16 %v2325
    %v2672 = vunpack.c.l.b16 %v2326
    %v2673 = vunpack.c.h.b16 %v2326
    %v2674 = vunpack.c.l.b16 %v2327
    %v2675 = vunpack.c.h.b16 %v2327
    %v2676 = vunpack.c.l.b16 %v2328
    %v2677 = vunpack.c.h.b16 %v2328
    %v2678 = vunpack.c.l.b16 %v2329
    %v2679 = vunpack.c.h.b16 %v2329
    %v2680 = vunpack.c.l.b16 %v2330
    %v2681 = vunpack.c.h.b16 %v2330
    %v2682 = vunpack.c.l.b16 %v2331
    %v2683 = vunpack.c.h.b16 %v2331
    %v2684 = vunpack.c.l.b16 %v2332
    %v2685 = vunpack.c.h.b16 %v2332
    %v2686 = vunpack.c.l.b16 %v2333
    %v2687 = vunpack.c.h.b16 %v2333
    %v2688 = vunpack.c.l.b16 %v2334
    %v2689 = vunpack.c.h.b16 %v2334
    %v2690 = vunpack.c.l.b16 %v2335
    %v2691 = vunpack.c.h.b16 %v2335
    %v2692 = vunpack.c.l.b16 %v2336
    %v2693 = vunpack.c.h.b16 %v2336
    %v2694 = vunpack.c.l.b16 %v2337
    %v2695 = vunpack.c.h.b16 %v2337
    %v2696 = vunpack.c.l.b16 %v2338
    %v2697 = vunpack.c.h.b16 %v2338
    %v2698 = vunpack.c.l.b16 %v2339
    %v2699 = vunpack.c.h.b16 %v2339
    %v2700 = vunpack.c.l.b16 %v2340
    %v2701 = vunpack.c.h.b16 %v2340
    %v2702 = vunpack.c.l.b16 %v2341
    %v2703 = vunpack.c.h.b16 %v2341
    %v2704 = vunpack.c.l.b16 %v2342
    %v2705 = vunpack.c.h.b16 %v2342
    %v2706 = vunpack.c.l.b16 %v2343
    %v2707 = vunpack.c.h.b16 %v2343
    %v2708 = vunpack.c.l.b16 %v2344
    %v2709 = vunpack.c.h.b16 %v2344
    %v2710 = vunpack.c.l.b16 %v2345
    %v2711 = vunpack.c.h.b16 %v2345
    %v2712 = vunpack.c.l.b16 %v2346
    %v2713 = vunpack.c.h.b16 %v2346
    %v2714 = vunpack.c.l.b16 %v2347
    %v2715 = vunpack.c.h.b16 %v2347
    %v2716 = vunpack.c.l.b16 %v2348
    %v2717 = vunpack.c.h.b16 %v2348
    %v2718 = vunpack.c.l.b16 %v2349
    %v2719 = vunpack.c.h.b16 %v2349
    %v2720 = vunpack.c.l.b16 %v2350
    %v2721 = vunpack.c.h.b16 %v2350
    %v2722 = vunpack.c.l.b16 %v2351
    %v2723 = vunpack.c.h.b16 %v2351
    %v2724 = vunpack.c.l.b16 %v2352
    %v2725 = vunpack.c.h.b16 %v2352
    %v2726 = vunpack.c.l.b16 %v2353
    %v2727 = vunpack.c.h.b16 %v2353
    %v2728 = vunpack.c.l.b16 %v2354
    %v2729 = vunpack.c.h.b16 %v2354
    %v2730 = vunpack.c.l.b16 %v2355
    %v2731 = vunpack.c.h.b16 %v2355
    %v2732 = vunpack.c.l.b16 %v2356
    %v2733 = vunpack.c.h.b16 %v2356
    %v2734 = vunpack.c.l.b16 %v2357
    %v2735 = vunpack.c.h.b16 %v2357
    %v2736 = vunpack.c.l.b16 %v2358
    %v2737 = vunpack.c.h.b16 %v2358
    %v2738 = vunpack.c.l.b16 %v2359
    %v2739 = vunpack.c.h.b16 %v2359
    %v2740 = vunpack.c.l.b16 %v2360
    %v2741 = vunpack.c.h.b16 %v2360
    %v2742 = vunpack.c.l.b16 %v2361
    %v2743 = vunpack.c.h.b16 %v2361
    %v2744 = vunpack.c.l.b16 %v2362
    %v2745 = vunpack.c.h.b16 %v2362
    %v2746 = vunpack.c.l.b16 %v2363
    %v2747 = vunpack.c.h.b16 %v2363
    %v2748 = vunpack.c.l.b16 %v2364
    %v2749 = vunpack.c.h.b16 %v2364
    %v2750 = vunpack.c.l.b16 %v2365
    %v2751 = vunpack.c.h.b16 %v2365
    %v2752 = vunpack.c.l.b16 %v2366
    %v2753 = vunpack.c.h.b16 %v2366
    %v2754 = vunpack.c.l.b16 %v2367
    %v2755 = vunpack.c.h.b16 %v2367
    %v2756 = vunpack.c.l.b16 %v2368
    %v2757 = vunpack.c.h.b16 %v2368
    %v2758 = vunpack.c.l.b16 %v2369
    %v2759 = vunpack.c.h.b16 %v2369
    %v2760 = vpack.c.b16 %v2506, %v2504
    %v2761 = vpack.c.b16 %v2507, %v2505
    %v2762 = vpack.c.b16 %v2510, %v2508
    %v2763 = vpack.c.b16 %v2511, %v2509
    %v2764 = vpack.c.b16 %v2514, %v2512
    %v2765 = vpack.c.b16 %v2515, %v2513
    %v2766 = vpack.c.b16 %v2518, %v2516
    %v2767 = vpack.c.b16 %v2519, %v2517
    %v2768 = vpack.c.b16 %v2522, %v2520
    %v2769 = vpack.c.b16 %v2523, %v2521
    %v2770 = vpack.c.b16 %v2526, %v2524
    %v2771 = vpack.c.b16 %v2527, %v2525
    %v2772 = vpack.c.b16 %v2530, %v2528
    %v2773 = vpack.c.b16 %v2531, %v2529
    %v2774 = vpack.c.b16 %v2534, %v2532
    %v2775 = vpack.c.b16 %v2535, %v2533
    %v2776 = vpack.c.b16 %v2538, %v2536
    %v2777 = vpack.c.b16 %v2539, %v2537
    %v2778 = vpack.c.b16 %v2542, %v2540
    %v2779 = vpack.c.b16 %v2543, %v2541
    %v2780 = vpack.c.b16 %v2546, %v2544
    %v2781 = vpack.c.b16 %v2547, %v2545
    %v2782 = vpack.c.b16 %v2550, %v2548
    %v2783 = vpack.c.b16 %v2551, %v2549
    %v2784 = vpack.c.b16 %v2554, %v2552
    %v2785 = vpack.c.b16 %v2555, %v2553
    %v2786 = vpack.c.b16 %v2558, %v2556
    %v2787 = vpack.c.b16 %v2559, %v2557
    %v2788 = vpack.c.b16 %v2562, %v2560
    %v2789 = vpack.c.b16 %v2563, %v2561
    %v2790 = vpack.c.b16 %v2566, %v2564
    %v2791 = vpack.c.b16 %v2567, %v2565
    %v2792 = vpack.c.b16 %v2570, %v2568
    %v2793 = vpack.c.b16 %v2571, %v2569
    %v2794 = vpack.c.b16 %v2574, %v2572
    %v2795 = vpack.c.b16 %v2575, %v2573
    %v2796 = vpack.c.b16 %v2578, %v2576
    %v2797 = vpack.c.b16 %v2579, %v2577
    %v2798 = vpack.c.b16 %v2582, %v2580
    %v2799 = vpack.c.b16 %v2583, %v2581
    %v2800 = vpack.c.b16 %v2586, %v2584
    %v2801 = vpack.c.b16 %v2587, %v2585
    %v2802 = vpack.c.b16 %v2590, %v2588
    %v2803 = vpack.c.b16 %v2591, %v2589
    %v2804 = vpack.c.b16 %v2594, %v2592
    %v2805 = vpack.c.b16 %v2595, %v2593
    %v2806 = vpack.c.b16 %v2598, %v2596
    %v2807 = vpack.c.b16 %v2599, %v2597
    %v2808 = vpack.c.b16 %v2602, %v2600
    %v2809 = vpack.c.b16 %v2603, %v2601
    %v2810 = vpack.c.b16 %v2606, %v2604
    %v2811 = vpack.c.b16 %v2607, %v2605
    %v2812 = vpack.c.b16 %v2610, %v2608
    %v2813 = vpack.c.b16 %v2611, %v2609
    %v2814 = vpack.c.b16 %v2614, %v2612
    %v2815 = vpack.c.b16 %v2615, %v2613
    %v2816 = vpack.c.b16 %v2618, %v2616
    %v2817 = vpack.c.b16 %v2619, %v2617
    %v2818 = vpack.c.b16 %v2622, %v2620
    %v2819 = vpack.c.b16 %v2623, %v2621
    %v2820 = vpack.c.b16 %v2626, %v2624
    %v2821 = vpack.c.b16 %v2627, %v2625
    %v2822 = vpack.c.b16 %v2630, %v2628
    %v2823 = vpack.c.b16 %v2631, %v2629
    %v2824 = vpack.c.b16 %v2634, %v2632
    %v2825 = vpack.c.b16 %v2635, %v2633
    %v2826 = vpack.c.b16 %v2638, %v2636
    %v2827 = vpack.c.b16 %v2639, %v2637
    %v2828 = vpack.c.b16 %v2642, %v2640
    %v2829 = vpack.c.b16 %v2643, %v2641
    %v2830 = vpack.c.b16 %v2646, %v2644
    %v2831 = vpack.c.b16 %v2647, %v2645
    %v2832 = vpack.c.b16 %v2650, %v2648
    %v2833 = vpack.c.b16 %v2651, %v2649
    %v2834 = vpack.c.b16 %v2654, %v2652
    %v2835 = vpack.c.b16 %v2655, %v2653
    %v2836 = vpack.c.b16 %v2658, %v2656
    %v2837 = vpack.c.b16 %v2659, %v2657
    %v2838 = vpack.c.b16 %v2662, %v2660
    %v2839 = vpack.c.b16 %v2663, %v2661
    %v2840 = vpack.c.b16 %v2666, %v2664
    %v2841 = vpack.c.b16 %v2667, %v2665
    %v2842 = vpack.c.b16 %v2670, %v2668
    %v2843 = vpack.c.b16 %v2671, %v2669
    %v2844 = vpack.c.b16 %v2674, %v2672
    %v2845 = vpack.c.b16 %v2675, %v2673
    %v2846 = vpack.c.b16 %v2678, %v2676
    %v2847 = vpack.c.b16 %v2679, %v2677
    %v2848 = vpack.c.b16 %v2682, %v2680
    %v2849 = vpack.c.b16 %v2683, %v2681
    %v2850 = vpack.c.b16 %v2686, %v2684
    %v2851 = vpack.c.b16 %v2687, %v2685
    %v2852 = vpack.c.b16 %v2690, %v2688
    %v2853 = vpack.c.b16 %v2691, %v2689
    %v2854 = vpack.c.b16 %v2694, %v2692
    %v2855 = vpack.c.b16 %v2695, %v2693
    %v2856 = vpack.c.b16 %v2698, %v2696
    %v2857 = vpack.c.b16 %v2699, %v2697
    %v2858 = vpack.c.b16 %v2702, %v2700
    %v2859 = vpack.c.b16 %v2703, %v2701
    %v2860 = vpack.c.b16 %v2706, %v2704
    %v2861 = vpack.c.b16 %v2707, %v2705
    %v2862 = vpack.c.b16 %v2710, %v2708
    %v2863 = vpack.c.b16 %v2711, %v2709
    %v2864 = vpack.c.b16 %v2714, %v2712
    %v2865 = vpack.c.b16 %v2715, %v2713
    %v2866 = vpack.c.b16 %v2718, %v2716
    %v2867 = vpack.c.b16 %v2719, %v2717
    %v2868 = vpack.c.b16 %v2722, %v2720
    %v2869 = vpack.c.b16 %v2723, %v2721
    %v2870 = vpack.c.b16 %v2726, %v2724
    %v2871 = vpack.c.b16 %v2727, %v2725
    %v2872 = vpack.c.b16 %v2730, %v2728
    %v2873 = vpack.c.b16 %v2731, %v2729
    %v2874 = vpack.c.b16 %v2734, %v2732
    %v2875 = vpack.c.b16 %v2735, %v2733
    %v2876 = vpack.c.b16 %v2738, %v2736
    %v2877 = vpack.c.b16 %v2739, %v2737
    %v2878 = vpack.c.b16 %v2742, %v2740
    %v2879 = vpack.c.b16 %v2743, %v2741
    %v2880 = vpack.c.b16 %v2746, %v2744
    %v2881 = vpack.c.b16 %v2747, %v2745
    %v2882 = vpack.c.b16 %v2750, %v2748
    %v2883 = vpack.c.b16 %v2751, %v2749
    %v2884 = vpack.c.b16 %v2754, %v2752
    %v2885 = vpack.c.b16 %v2755, %v2753
    %v2886 = vpack.c.b16 %v2758, %v2756
    %v2887 = vpack.c.b16 %v2759, %v2757
    %3016 = vmatpush.bf16.msra.mxu0 %v2774
    %3017 = vmatpush.bf16.msra.mxu0 %v2772
    %3018 = vmatpush.bf16.msra.mxu0 %v2770
    %3019 = vmatpush.bf16.msra.mxu0 %v2768
    %3020 = vmatpush.bf16.msra.mxu0 %v2766
    %3021 = vmatpush.bf16.msra.mxu0 %v2764
    %3022 = vmatpush.bf16.msra.mxu0 %v2762
    %3023 = vmatpush.bf16.msra.mxu0 %v2760
    %3024 = vmatmul.bf16.gmra.mxu0 %v2234
    %v3025 = vpop.f32.mrf.mxu0
    %v3026 = vadd.f32 %v2372, %v3025
    %v3027 = vpop.f32.mrf.mxu0
    %3028 = vdwg.mxu0
    %3029 = vmatpush.bf16.msra.mxu0 %v2790
    %3030 = vmatpush.bf16.msra.mxu0 %v2788
    %3031 = vmatpush.bf16.msra.mxu0 %v2786
    %3032 = vmatpush.bf16.msra.mxu0 %v2784
    %3033 = vmatpush.bf16.msra.mxu0 %v2782
    %3034 = vmatpush.bf16.msra.mxu0 %v2780
    %3035 = vmatpush.bf16.msra.mxu0 %v2778
    %3036 = vmatpush.bf16.msra.mxu0 %v2776
    %3037 = vmatmul.bf16.gmra.mxu0 %v2235
    %v3038 = vpop.f32.mrf.mxu0
    %v3039 = vadd.f32 %v3026, %v3038
    %v3040 = vpop.f32.mrf.mxu0
    %3041 = vdwg.mxu0
    %3042 = vmatpush.bf16.msra.mxu0 %v2806
    %3043 = vmatpush.bf16.msra.mxu0 %v2804
    %3044 = vmatpush.bf16.msra.mxu0 %v2802
    %3045 = vmatpush.bf16.msra.mxu0 %v2800
    %3046 = vmatpush.bf16.msra.mxu0 %v2798
    %3047 = vmatpush.bf16.msra.mxu0 %v2796
    %3048 = vmatpush.bf16.msra.mxu0 %v2794
    %3049 = vmatpush.bf16.msra.mxu0 %v2792
    %3050 = vmatmul.bf16.gmra.mxu0 %v2236
    %v3051 = vpop.f32.mrf.mxu0
    %v3052 = vadd.f32 %v3039, %v3051
    %v3053 = vpop.f32.mrf.mxu0
    %3054 = vdwg.mxu0
    %3055 = vmatpush.bf16.msra.mxu0 %v2822
    %3056 = vmatpush.bf16.msra.mxu0 %v2820
    %3057 = vmatpush.bf16.msra.mxu0 %v2818
    %3058 = vmatpush.bf16.msra.mxu0 %v2816
    %3059 = vmatpush.bf16.msra.mxu0 %v2814
    %3060 = vmatpush.bf16.msra.mxu0 %v2812
    %3061 = vmatpush.bf16.msra.mxu0 %v2810
    %3062 = vmatpush.bf16.msra.mxu0 %v2808
    %3063 = vmatmul.bf16.gmra.mxu0 %v2237
    %v3064 = vpop.f32.mrf.mxu0
    %v3065 = vadd.f32 %v3052, %v3064
    %v3066 = vpop.f32.mrf.mxu0
    %3067 = vdwg.mxu0
    %3068 = vmatpush.bf16.msra.mxu0 %v2838
    %3069 = vmatpush.bf16.msra.mxu0 %v2836
    %3070 = vmatpush.bf16.msra.mxu0 %v2834
    %3071 = vmatpush.bf16.msra.mxu0 %v2832
    %3072 = vmatpush.bf16.msra.mxu0 %v2830
    %3073 = vmatpush.bf16.msra.mxu0 %v2828
    %3074 = vmatpush.bf16.msra.mxu0 %v2826
    %3075 = vmatpush.bf16.msra.mxu0 %v2824
    %3076 = vmatmul.bf16.gmra.mxu0 %v2238
    %v3077 = vpop.f32.mrf.mxu0
    %v3078 = vadd.f32 %v3065, %v3077
    %v3079 = vpop.f32.mrf.mxu0
    %3080 = vdwg.mxu0
    %3081 = vmatpush.bf16.msra.mxu0 %v2854
    %3082 = vmatpush.bf16.msra.mxu0 %v2852
    %3083 = vmatpush.bf16.msra.mxu0 %v2850
    %3084 = vmatpush.bf16.msra.mxu0 %v2848
    %3085 = vmatpush.bf16.msra.mxu0 %v2846
    %3086 = vmatpush.bf16.msra.mxu0 %v2844
    %3087 = vmatpush.bf16.msra.mxu0 %v2842
    %3088 = vmatpush.bf16.msra.mxu0 %v2840
    %3089 = vmatmul.bf16.gmra.mxu0 %v2239
    %v3090 = vpop.f32.mrf.mxu0
    %v3091 = vadd.f32 %v3078, %v3090
    %v3092 = vpop.f32.mrf.mxu0
    %3093 = vdwg.mxu0
    %3094 = vmatpush.bf16.msra.mxu0 %v2870
    %3095 = vmatpush.bf16.msra.mxu0 %v2868
    %3096 = vmatpush.bf16.msra.mxu0 %v2866
    %3097 = vmatpush.bf16.msra.mxu0 %v2864
    %3098 = vmatpush.bf16.msra.mxu0 %v2862
    %3099 = vmatpush.bf16.msra.mxu0 %v2860
    %3100 = vmatpush.bf16.msra.mxu0 %v2858
    %3101 = vmatpush.bf16.msra.mxu0 %v2856
    %3102 = vmatmul.bf16.gmra.mxu0 %v2240
    %v3103 = vpop.f32.mrf.mxu0
    %v3104 = vadd.f32 %v3091, %v3103
    %v3105 = vpop.f32.mrf.mxu0
    %3106 = vdwg.mxu0
    %3107 = vmatpush.bf16.msra.mxu0 %v2886
    %3108 = vmatpush.bf16.msra.mxu0 %v2884
    %3109 = vmatpush.bf16.msra.mxu0 %v2882
    %3110 = vmatpush.bf16.msra.mxu0 %v2880
    %3111 = vmatpush.bf16.msra.mxu0 %v2878
    %3112 = vmatpush.bf16.msra.mxu0 %v2876
    %3113 = vmatpush.bf16.msra.mxu0 %v2874
    %3114 = vmatpush.bf16.msra.mxu0 %v2872
    %3115 = vmatmul.bf16.gmra.mxu0 %v2241
    %v3116 = vpop.f32.mrf.mxu0
    %v3117 = vadd.f32 %v3104, %v3116
    %v3118 = vpop.f32.mrf.mxu0
    %3119 = vdwg.mxu0
    %3120 = vmatpush.bf16.msra.mxu0 %v2775
    %3121 = vmatpush.bf16.msra.mxu0 %v2773
    %3122 = vmatpush.bf16.msra.mxu0 %v2771
    %3123 = vmatpush.bf16.msra.mxu0 %v2769
    %3124 = vmatpush.bf16.msra.mxu0 %v2767
    %3125 = vmatpush.bf16.msra.mxu0 %v2765
    %3126 = vmatpush.bf16.msra.mxu0 %v2763
    %3127 = vmatpush.bf16.msra.mxu0 %v2761
    %3128 = vmatmul.bf16.gmra.mxu0 %v2234
    %v3129 = vpop.f32.mrf.mxu0
    %v3130 = vadd.f32 %v2373, %v3129
    %v3131 = vpop.f32.mrf.mxu0
    %3132 = vdwg.mxu0
    %3133 = vmatpush.bf16.msra.mxu0 %v2791
    %3134 = vmatpush.bf16.msra.mxu0 %v2789
    %3135 = vmatpush.bf16.msra.mxu0 %v2787
    %3136 = vmatpush.bf16.msra.mxu0 %v2785
    %3137 = vmatpush.bf16.msra.mxu0 %v2783
    %3138 = vmatpush.bf16.msra.mxu0 %v2781
    %3139 = vmatpush.bf16.msra.mxu0 %v2779
    %3140 = vmatpush.bf16.msra.mxu0 %v2777
    %3141 = vmatmul.bf16.gmra.mxu0 %v2235
    %v3142 = vpop.f32.mrf.mxu0
    %v3143 = vadd.f32 %v3130, %v3142
    %v3144 = vpop.f32.mrf.mxu0
    %3145 = vdwg.mxu0
    %3146 = vmatpush.bf16.msra.mxu0 %v2807
    %3147 = vmatpush.bf16.msra.mxu0 %v2805
    %3148 = vmatpush.bf16.msra.mxu0 %v2803
    %3149 = vmatpush.bf16.msra.mxu0 %v2801
    %3150 = vmatpush.bf16.msra.mxu0 %v2799
    %3151 = vmatpush.bf16.msra.mxu0 %v2797
    %3152 = vmatpush.bf16.msra.mxu0 %v2795
    %3153 = vmatpush.bf16.msra.mxu0 %v2793
    %3154 = vmatmul.bf16.gmra.mxu0 %v2236
    %v3155 = vpop.f32.mrf.mxu0
    %v3156 = vadd.f32 %v3143, %v3155
    %v3157 = vpop.f32.mrf.mxu0
    %3158 = vdwg.mxu0
    %3159 = vmatpush.bf16.msra.mxu0 %v2823
    %3160 = vmatpush.bf16.msra.mxu0 %v2821
    %3161 = vmatpush.bf16.msra.mxu0 %v2819
    %3162 = vmatpush.bf16.msra.mxu0 %v2817
    %3163 = vmatpush.bf16.msra.mxu0 %v2815
    %3164 = vmatpush.bf16.msra.mxu0 %v2813
    %3165 = vmatpush.bf16.msra.mxu0 %v2811
    %3166 = vmatpush.bf16.msra.mxu0 %v2809
    %3167 = vmatmul.bf16.gmra.mxu0 %v2237
    %v3168 = vpop.f32.mrf.mxu0
    %v3169 = vadd.f32 %v3156, %v3168
    %v3170 = vpop.f32.mrf.mxu0
    %3171 = vdwg.mxu0
    %3172 = vmatpush.bf16.msra.mxu0 %v2839
    %3173 = vmatpush.bf16.msra.mxu0 %v2837
    %3174 = vmatpush.bf16.msra.mxu0 %v2835
    %3175 = vmatpush.bf16.msra.mxu0 %v2833
    %3176 = vmatpush.bf16.msra.mxu0 %v2831
    %3177 = vmatpush.bf16.msra.mxu0 %v2829
    %3178 = vmatpush.bf16.msra.mxu0 %v2827
    %3179 = vmatpush.bf16.msra.mxu0 %v2825
    %3180 = vmatmul.bf16.gmra.mxu0 %v2238
    %v3181 = vpop.f32.mrf.mxu0
    %v3182 = vadd.f32 %v3169, %v3181
    %v3183 = vpop.f32.mrf.mxu0
    %3184 = vdwg.mxu0
    %3185 = vmatpush.bf16.msra.mxu0 %v2855
    %3186 = vmatpush.bf16.msra.mxu0 %v2853
    %3187 = vmatpush.bf16.msra.mxu0 %v2851
    %3188 = vmatpush.bf16.msra.mxu0 %v2849
    %3189 = vmatpush.bf16.msra.mxu0 %v2847
    %3190 = vmatpush.bf16.msra.mxu0 %v2845
    %3191 = vmatpush.bf16.msra.mxu0 %v2843
    %3192 = vmatpush.bf16.msra.mxu0 %v2841
    %3193 = vmatmul.bf16.gmra.mxu0 %v2239
    %v3194 = vpop.f32.mrf.mxu0
    %v3195 = vadd.f32 %v3182, %v3194
    %v3196 = vpop.f32.mrf.mxu0
    %3197 = vdwg.mxu0
    %3198 = vmatpush.bf16.msra.mxu0 %v2871
    %3199 = vmatpush.bf16.msra.mxu0 %v2869
    %3200 = vmatpush.bf16.msra.mxu0 %v2867
    %3201 = vmatpush.bf16.msra.mxu0 %v2865
    %3202 = vmatpush.bf16.msra.mxu0 %v2863
    %3203 = vmatpush.bf16.msra.mxu0 %v2861
    %3204 = vmatpush.bf16.msra.mxu0 %v2859
    %3205 = vmatpush.bf16.msra.mxu0 %v2857
    %3206 = vmatmul.bf16.gmra.mxu0 %v2240
    %v3207 = vpop.f32.mrf.mxu0
    %v3208 = vadd.f32 %v3195, %v3207
    %v3209 = vpop.f32.mrf.mxu0
    %3210 = vdwg.mxu0
    %3211 = vmatpush.bf16.msra.mxu0 %v2887
    %3212 = vmatpush.bf16.msra.mxu0 %v2885
    %3213 = vmatpush.bf16.msra.mxu0 %v2883
    %3214 = vmatpush.bf16.msra.mxu0 %v2881
    %3215 = vmatpush.bf16.msra.mxu0 %v2879
    %3216 = vmatpush.bf16.msra.mxu0 %v2877
    %3217 = vmatpush.bf16.msra.mxu0 %v2875
    %3218 = vmatpush.bf16.msra.mxu0 %v2873
    %3219 = vmatmul.bf16.gmra.mxu0 %v2241
    %v3220 = vpop.f32.mrf.mxu0
    %v3221 = vadd.f32 %v3208, %v3220
    %v3222 = vpop.f32.mrf.mxu0
    %3223 = vdwg.mxu0
    %v3224 = vmax.f32 %v3117, 0.0
    %v3225 = vmax.f32 %v3221, 0.0
    %v3226 = vpack.c.bf16 %v3224, %v3224
    %v3227 = vpack.c.bf16 %v3225, %v3225
    %v3228 = vld [vmem:[#allocation9] sm:$0xf]
    %v3229 = vld [vmem:[#allocation9 + $0x4] sm:$0xf]
    %v3230 = vld [vmem:[#allocation9 + $0x8] sm:$0xf]
    %v3231 = vld [vmem:[#allocation9 + $0xc] sm:$0xf]
    %v3232 = vld [vmem:[#allocation9 + $0x10] sm:$0xf]
    %v3233 = vld [vmem:[#allocation9 + $0x14] sm:$0xf]
    %v3234 = vld [vmem:[#allocation9 + $0x18] sm:$0xf]
    %v3235 = vld [vmem:[#allocation9 + $0x1c] sm:$0xf]
    %v3236 = vld [vmem:[#allocation9 + $0x20] sm:$0xf]
    %v3237 = vld [vmem:[#allocation9 + $0x24] sm:$0xf]
    %v3238 = vld [vmem:[#allocation9 + $0x28] sm:$0xf]
    %v3239 = vld [vmem:[#allocation9 + $0x2c] sm:$0xf]
    %v3240 = vld [vmem:[#allocation9 + $0x30] sm:$0xf]
    %v3241 = vld [vmem:[#allocation9 + $0x34] sm:$0xf]
    %v3242 = vld [vmem:[#allocation9 + $0x38] sm:$0xf]
    %v3243 = vld [vmem:[#allocation9 + $0x3c] sm:$0xf]
    %v3244 = vld [vmem:[#allocation9 + $0x40] sm:$0xf]
    %v3245 = vld [vmem:[#allocation9 + $0x44] sm:$0xf]
    %v3246 = vld [vmem:[#allocation9 + $0x48] sm:$0xf]
    %v3247 = vld [vmem:[#allocation9 + $0x4c] sm:$0xf]
    %v3248 = vld [vmem:[#allocation9 + $0x50] sm:$0xf]
    %v3249 = vld [vmem:[#allocation9 + $0x54] sm:$0xf]
    %v3250 = vld [vmem:[#allocation9 + $0x58] sm:$0xf]
    %v3251 = vld [vmem:[#allocation9 + $0x5c] sm:$0xf]
    %v3252 = vld [vmem:[#allocation9 + $0x60] sm:$0xf]
    %v3253 = vld [vmem:[#allocation9 + $0x64] sm:$0xf]
    %v3254 = vld [vmem:[#allocation9 + $0x68] sm:$0xf]
    %v3255 = vld [vmem:[#allocation9 + $0x6c] sm:$0xf]
    %v3256 = vld [vmem:[#allocation9 + $0x70] sm:$0xf]
    %v3257 = vld [vmem:[#allocation9 + $0x74] sm:$0xf]
    %v3258 = vld [vmem:[#allocation9 + $0x78] sm:$0xf]
    %v3259 = vld [vmem:[#allocation9 + $0x7c] sm:$0xf]
    %v3260 = vld [vmem:[%s8] sm:$0x1]
    %v3262 = vperm.slane %v3260, 0
    %v3296 = vunpack.c.l.b16 %v3228
    %v3297 = vunpack.c.l.b16 %v3229
    %v3298 = vunpack.c.l.b16 %v3230
    %v3299 = vunpack.c.l.b16 %v3231
    %v3300 = vunpack.c.l.b16 %v3232
    %v3301 = vunpack.c.l.b16 %v3233
    %v3302 = vunpack.c.l.b16 %v3234
    %v3303 = vunpack.c.l.b16 %v3235
    %v3304 = vunpack.c.l.b16 %v3236
    %v3305 = vunpack.c.l.b16 %v3237
    %v3306 = vunpack.c.l.b16 %v3238
    %v3307 = vunpack.c.l.b16 %v3239
    %v3308 = vunpack.c.l.b16 %v3240
    %v3309 = vunpack.c.l.b16 %v3241
    %v3310 = vunpack.c.l.b16 %v3242
    %v3311 = vunpack.c.l.b16 %v3243
    %v3312 = vunpack.c.l.b16 %v3244
    %v3313 = vunpack.c.l.b16 %v3245
    %v3314 = vunpack.c.l.b16 %v3246
    %v3315 = vunpack.c.l.b16 %v3247
    %v3316 = vunpack.c.l.b16 %v3248
    %v3317 = vunpack.c.l.b16 %v3249
    %v3318 = vunpack.c.l.b16 %v3250
    %v3319 = vunpack.c.l.b16 %v3251
    %v3320 = vunpack.c.l.b16 %v3252
    %v3321 = vunpack.c.l.b16 %v3253
    %v3322 = vunpack.c.l.b16 %v3254
    %v3323 = vunpack.c.l.b16 %v3255
    %v3324 = vunpack.c.l.b16 %v3256
    %v3325 = vunpack.c.l.b16 %v3257
    %v3326 = vunpack.c.l.b16 %v3258
    %v3327 = vunpack.c.l.b16 %v3259
    %v3328 = vpack.c.b16 %v3297, %v3296
    %v3329 = vpack.c.b16 %v3299, %v3298
    %v3330 = vpack.c.b16 %v3301, %v3300
    %v3331 = vpack.c.b16 %v3303, %v3302
    %v3332 = vpack.c.b16 %v3305, %v3304
    %v3333 = vpack.c.b16 %v3307, %v3306
    %v3334 = vpack.c.b16 %v3309, %v3308
    %v3335 = vpack.c.b16 %v3311, %v3310
    %v3336 = vpack.c.b16 %v3313, %v3312
    %v3337 = vpack.c.b16 %v3315, %v3314
    %v3338 = vpack.c.b16 %v3317, %v3316
    %v3339 = vpack.c.b16 %v3319, %v3318
    %v3340 = vpack.c.b16 %v3321, %v3320
    %v3341 = vpack.c.b16 %v3323, %v3322
    %v3342 = vpack.c.b16 %v3325, %v3324
    %v3343 = vpack.c.b16 %v3327, %v3326
    %3360 = vmatpush.bf16.msra.mxu0 %v3335
    %3361 = vmatpush.bf16.msra.mxu0 %v3334
    %3362 = vmatpush.bf16.msra.mxu0 %v3333
    %3363 = vmatpush.bf16.msra.mxu0 %v3332
    %3364 = vmatpush.bf16.msra.mxu0 %v3331
    %3365 = vmatpush.bf16.msra.mxu0 %v3330
    %3366 = vmatpush.bf16.msra.mxu0 %v3329
    %3367 = vmatpush.bf16.msra.mxu0 %v3328
    %3368 = vmatmul.bf16.gmra.mxu0 %v3226
    %v3369 = vpop.f32.mrf.mxu0
    %v3370 = vadd.f32 %v3262, %v3369
    %v3371 = vpop.f32.mrf.mxu0
    %3372 = vdwg.mxu0
    %3373 = vmatpush.bf16.msra.mxu0 %v3343
    %3374 = vmatpush.bf16.msra.mxu0 %v3342
    %3375 = vmatpush.bf16.msra.mxu0 %v3341
    %3376 = vmatpush.bf16.msra.mxu0 %v3340
    %3377 = vmatpush.bf16.msra.mxu0 %v3339
    %3378 = vmatpush.bf16.msra.mxu0 %v3338
    %3379 = vmatpush.bf16.msra.mxu0 %v3337
    %3380 = vmatpush.bf16.msra.mxu0 %v3336
    %3381 = vmatmul.bf16.gmra.mxu0 %v3227
    %v3382 = vpop.f32.mrf.mxu0
    %v3383 = vadd.f32 %v3370, %v3382
    %v3384 = vpop.f32.mrf.mxu0
    %3385 = vdwg.mxu0
    %v3386 = vmax.f32 %v3383, 0.0
    %v3387 = vpack.c.bf16 %v3386, %v3386
    %v3388 = vld [vmem:[#allocation10] sm:$0xf]
    %v3389 = vld [vmem:[#allocation10 + $0x4] sm:$0xf]
    %v3390 = vld [vmem:[#allocation10 + $0x8] sm:$0xf]
    %v3391 = vld [vmem:[#allocation10 + $0xc] sm:$0xf]
    %v3392 = vld [vmem:[#allocation10 + $0x10] sm:$0xf]
    %v3393 = vld [vmem:[#allocation10 + $0x14] sm:$0xf]
    %v3394 = vld [vmem:[#allocation10 + $0x18] sm:$0xf]
    %v3395 = vld [vmem:[#allocation10 + $0x1c] sm:$0xf]
    %v3396 = vld [vmem:[#allocation10 + $0x20] sm:$0xf]
    %v3397 = vld [vmem:[#allocation10 + $0x24] sm:$0xf]
    %v3398 = vld [vmem:[#allocation10 + $0x28] sm:$0xf]
    %v3399 = vld [vmem:[#allocation10 + $0x2c] sm:$0xf]
    %v3400 = vld [vmem:[#allocation10 + $0x30] sm:$0xf]
    %v3401 = vld [vmem:[#allocation10 + $0x34] sm:$0xf]
    %v3402 = vld [vmem:[#allocation10 + $0x38] sm:$0xf]
    %v3403 = vld [vmem:[#allocation10 + $0x3c] sm:$0xf]
    %v3404 = vld [vmem:[%s10] sm:$0x1]
    %v3406 = vperm.slane %v3404, 0
    %v3424 = vunpack.c.l.b16 %v3388
    %v3425 = vunpack.c.l.b16 %v3389
    %v3426 = vunpack.c.l.b16 %v3390
    %v3427 = vunpack.c.l.b16 %v3391
    %v3428 = vunpack.c.l.b16 %v3392
    %v3429 = vunpack.c.l.b16 %v3393
    %v3430 = vunpack.c.l.b16 %v3394
    %v3431 = vunpack.c.l.b16 %v3395
    %v3432 = vunpack.c.l.b16 %v3396
    %v3433 = vunpack.c.l.b16 %v3397
    %v3434 = vunpack.c.l.b16 %v3398
    %v3435 = vunpack.c.l.b16 %v3399
    %v3436 = vunpack.c.l.b16 %v3400
    %v3437 = vunpack.c.l.b16 %v3401
    %v3438 = vunpack.c.l.b16 %v3402
    %v3439 = vunpack.c.l.b16 %v3403
    %v3440 = vpack.c.b16 %v3425, %v3424
    %v3441 = vpack.c.b16 %v3427, %v3426
    %v3442 = vpack.c.b16 %v3429, %v3428
    %v3443 = vpack.c.b16 %v3431, %v3430
    %v3444 = vpack.c.b16 %v3433, %v3432
    %v3445 = vpack.c.b16 %v3435, %v3434
    %v3446 = vpack.c.b16 %v3437, %v3436
    %v3447 = vpack.c.b16 %v3439, %v3438
    %3456 = vmatpush.bf16.msra.mxu0 %v3447
    %3457 = vmatpush.bf16.msra.mxu0 %v3446
    %3458 = vmatpush.bf16.msra.mxu0 %v3445
    %3459 = vmatpush.bf16.msra.mxu0 %v3444
    %3460 = vmatpush.bf16.msra.mxu0 %v3443
    %3461 = vmatpush.bf16.msra.mxu0 %v3442
    %3462 = vmatpush.bf16.msra.mxu0 %v3441
    %3463 = vmatpush.bf16.msra.mxu0 %v3440
    %3464 = vmatmul.bf16.gmra.mxu0 %v3387
    %v3465 = vpop.f32.mrf.mxu0
    %v3466 = vadd.f32 %v3406, %v3465
    %v3467 = vpop.f32.mrf.mxu0
    %3468 = vdwg.mxu0
    %3469 = vst [vmem:[%s11] sm:$0xff] %v3466
    // Predicated region
    $region70: #{convqnet_forward.1} parent=1 // pred_check
      _
    $region71: #{convqnet_forward.1} parent=1 // pred_check_branch
      %3471 = sbr.rel (0) target = $region73
    $region72: #{convqnet_forward.1} parent=1 // pred_region
      _
    $region73: #{convqnet_forward.1} parent=1 // pred_fallthru
      _
    // Predicated region
    $region74: #{convqnet_forward.1} parent=1 // pred_check
      _
    $region75: #{convqnet_forward.1} parent=1 // pred_check_branch
      %3473 = sbr.rel (0) target = $region77
    $region76: #{convqnet_forward.1} parent=1 // pred_region
      _
    $region77: #{convqnet_forward.1} parent=1 // pred_fallthru
      _
    %3474 = vsyncpa [#allocation3], 1
    %3475 = vsyncpa [#allocation5], 1
    %3476 = vsyncpa [#allocation8], 1
    %3477 = vsyncpa [#allocation11], 1

</llo_original>
